<compile_context>
chip_gen: v7x
topology: tpu7x:2x2x1
jax: 0.10.0
libtpu: 0.0.40
codegen_flags: <defaults>
</compile_context>

<pallas_src>
import jax
import jax.numpy as jnp
from jax.experimental import pallas as pl
from jax.experimental.pallas import tpu as pltpu

EPS = 1e-5


# ----------------------------- fused kernel -------------------------------- #

def down_fused_kernel(x_ref, w1_ref, w2_ref, sb_ref, o_ref, pad1_ref, pad2_ref):
    # x_ref  : (B, Hp, Wp, Cin)      pooled input, channels-last
    # w1_ref : (9*Cin,  Cout)        im2col weights, tap-major (dy*3+dx, ci)
    # w2_ref : (9*Cout, Cout)
    # sb_ref : (4, Cout)             rows = [scale1, bias1, scale2, bias2]
    # o_ref  : (Cout, B*Hp*Wp)       lane-dense (128 lanes), NCHW after wrapper reshape
    # pad*   : VMEM scratch (B, Hp+2, Wp+2, C) zero-padded conv inputs (1-px halo)
    B, Hp2, Wp2, _ = pad1_ref.shape
    Hp, Wp = Hp2 - 2, Wp2 - 2
    M = B * Hp * Wp

    def conv_bn_relu(pad_ref, src, w_ref, s, b):
        cin = pad_ref.shape[-1]
        # Zero the padded buffer (once per call: single grid step), then write the
        # interior.  The interior store must never touch the 1-pixel halo ring —
        # that keeps the border zero for the second conv as well.
        pad_ref[...] = jnp.zeros_like(pad_ref)
        pad_ref[:, 1:Hp + 1, 1:Wp + 1, :] = src
        # im2col: one (B*Hp*Wp, 9*Cin) patch -> a single MXU matmul (K = 9*Cin).
        cols = [pad_ref[:, dy:dy + Hp, dx:dx + Wp, :]
                for dy in range(3) for dx in range(3)]
        patch = jnp.concatenate(cols, axis=-1).reshape(M, 9 * cin)
        acc = jnp.dot(patch, w_ref[...], preferred_element_type=jnp.float32)
        # Folded BN + ReLU on the matmul-native (M, Cout) layout.
        return jnp.maximum(acc * s + b, 0.0)

    y1 = conv_bn_relu(pad1_ref, x_ref[...], w1_ref,
                      sb_ref[0:1, :], sb_ref[1:2, :])                 # (M, Cout)
    y2 = conv_bn_relu(pad2_ref, y1.reshape(B, Hp, Wp, -1), w2_ref,
                      sb_ref[2:3, :], sb_ref[3:4, :])                 # (M, Cout)

    # Lane-dense store: (Cout, B*Hp*Wp) puts 128 live lanes on the lane axis.
    o_ref[...] = y2.T


# ----------------------------- wrapper -------------------------------------- #

def fold_bn(params):
    """Fold Conv bias + eval-mode BatchNorm into (w_im2col, scale, bias)."""
    w, b, gamma, beta, rmean, rvar = params
    cout, cin = w.shape[0], w.shape[1]
    scale = gamma / jnp.sqrt(rvar + EPS)
    bias = (b - rmean) * scale + beta
    # (Cout, Cin, 3, 3) -> (dy, dx, cin, cout) -> (9*Cin, Cout), tap-major.
    w_i2c = jnp.transpose(w, (2, 3, 1, 0)).reshape(9 * cin, cout)
    return w_i2c, scale.reshape(1, cout), bias.reshape(1, cout)


def down_forward(x_nchw, params1, params2):
    B, Cin, H, W = x_nchw.shape
    assert H % 2 == 0 and W % 2 == 0, "MaxPool2d(2) fused path needs even H, W"
    Hp, Wp = H // 2, W // 2
    M = B * Hp * Wp

    w1, s1, b1 = fold_bn(params1)
    w2, s2, b2 = fold_bn(params2)
    Cout = w1.shape[-1]
    sb = jnp.concatenate([s1, b1, s2, b2], axis=0)          # (4, Cout)

    # NCHW -> channels-last relayout fused with the 2x2 max-pool in ONE XLA
    # transpose + reduce: the kernel input DMA is 4x smaller than the unpooled x.
    pooled = jnp.transpose(
        x_nchw.reshape(B, Cin, Hp, 2, Wp, 2), (0, 2, 4, 1, 3, 5)
    ).max(axis=(4, 5))                                        # (B, Hp, Wp, Cin)

    out = pl.pallas_call(
        down_fused_kernel,
        out_shape=jax.ShapeDtypeStruct((Cout, M), jnp.float32),
        grid=(1,),
        in_specs=[
            pl.BlockSpec((B, Hp, Wp, Cin), lambda i: (0, 0, 0, 0)),
            pl.BlockSpec((9 * Cin, Cout), lambda i: (0, 0)),
            pl.BlockSpec((9 * Cout, Cout), lambda i: (0, 0)),
            pl.BlockSpec((4, Cout), lambda i: (0, 0)),
        ],
        out_specs=pl.BlockSpec((Cout, M), lambda i: (0, 0)),
        scratch_shapes=[
            pltpu.VMEM((B, Hp + 2, Wp + 2, Cin), jnp.float32),
            pltpu.VMEM((B, Hp + 2, Wp + 2, Cout), jnp.float32),
        ],
        compiler_params=pltpu.CompilerParams(
            dimension_semantics=("arbitrary",)),
    )(pooled, w1, w2, sb)

    # (Cout, B*Hp*Wp) -> (B, Cout, Hp, Wp): tiny wrapper-side relayout.
    return jnp.transpose(out.reshape(Cout, B, Hp, Wp), (1, 0, 2, 3))


# ----------------------------- reference ----------------------------------- #

def reference(x_nchw, params1, params2):
    x = jnp.transpose(x_nchw, (0, 2, 3, 1))
    B, H, W, C = x.shape
    x = x.reshape(B, H // 2, 2, W // 2, 2, C).max(axis=(2, 4))
    for (w, b, gamma, beta, rmean, rvar) in (params1, params2):
        whwio = jnp.transpose(w, (2, 3, 1, 0))
        z = jax.lax.conv_general_dilated(
            x, whwio, (1, 1), "SAME",
            dimension_numbers=("NHWC", "HWIO", "NHWC")) + b
        z = (z - rmean) / jnp.sqrt(rvar + EPS) * gamma + beta
        x = jnp.maximum(z, 0.0)
    return jnp.transpose(x, (0, 3, 1, 2))


# ------------------------------- main --------------------------------------- #

if __name__ == "__main__":
    B, in_ch, out_ch, H, W = 2, 4, 8, 16, 16
    key = jax.random.PRNGKey(0)
    ks = jax.random.split(key, 13)
    x = jax.random.normal(ks[0], (B, in_ch, H, W), jnp.float32)

    def init_block(keys, cin, cout):
        w = 0.1 * jax.random.normal(keys[0], (cout, cin, 3, 3), jnp.float32)
        b = 0.1 * jax.random.normal(keys[1], (cout,), jnp.float32)
        gamma = 1.0 + 0.1 * jax.random.normal(keys[2], (cout,), jnp.float32)
        beta = 0.1 * jax.random.normal(keys[3], (cout,), jnp.float32)
        rmean = 0.1 * jax.random.normal(keys[4], (cout,), jnp.float32)
        rvar = jnp.abs(jax.random.normal(keys[5], (cout,), jnp.float32)) + 0.5
        return (w, b, gamma, beta, rmean, rvar)

    params1 = init_block(ks[1:7], in_ch, out_ch)
    params2 = init_block(ks[7:13], out_ch, out_ch)

    down_fn = jax.jit(down_forward)
    y = jax.block_until_ready(down_fn(x, params1, params2))
    y_ref = reference(x, params1, params2)

    assert y.shape == (B, out_ch, H // 2, W // 2), y.shape
    assert jnp.allclose(y, y_ref, atol=1e-4, rtol=1e-4), "mismatch vs reference"
    print("KERNEL_OK")
</pallas_src>

<mosaic_0001>
module attributes {stable_mosaic.version = 11 : i64} {
  func.func @down_fused_kernel(%arg0: i32, %arg1: memref<2x8x8x4xf32, #tpu.memory_space<vmem>>, %arg2: memref<36x8xf32, #tpu.memory_space<vmem>>, %arg3: memref<72x8xf32, #tpu.memory_space<vmem>>, %arg4: memref<4x8xf32, #tpu.memory_space<vmem>>, %arg5: memref<8x128xf32, #tpu.memory_space<vmem>>, %arg6: memref<2x10x10x4xf32, #tpu.memory_space<vmem>>, %arg7: memref<2x10x10x8xf32, #tpu.memory_space<vmem>>) attributes {dimension_semantics = [#tpu.dimension_semantics<arbitrary>], iteration_bounds = array<i64: 1>, scalar_prefetch = 0 : i64, scratch_operands = 2 : i64, tpu.core_type = #tpu.core_type<tc>, window_params = [{pipeline_mode = #tpu.pipeline_mode<synchronous>, transform_indices = @transform_0, window_bounds = array<i64: 2, 8, 8, 4>}, {pipeline_mode = #tpu.pipeline_mode<synchronous>, transform_indices = @transform_1, window_bounds = array<i64: 36, 8>}, {pipeline_mode = #tpu.pipeline_mode<synchronous>, transform_indices = @transform_2, window_bounds = array<i64: 72, 8>}, {pipeline_mode = #tpu.pipeline_mode<synchronous>, transform_indices = @transform_3, window_bounds = array<i64: 4, 8>}, {pipeline_mode = #tpu.pipeline_mode<synchronous>, transform_indices = @transform_4, window_bounds = array<i64: 8, 128>}]} {
    %c0 = arith.constant 0 : index
    %c0_0 = arith.constant 0 : index
    %c0_1 = arith.constant 0 : index
    %c0_2 = arith.constant 0 : index
    %0 = vector.load %arg1[%c0, %c0_0, %c0_1, %c0_2] : memref<2x8x8x4xf32, #tpu.memory_space<vmem>>, vector<2x8x8x4xf32>
    %c0_3 = arith.constant 0 : index
    %c0_4 = arith.constant 0 : index
    %1 = vector.load %arg4[%c0_3, %c0_4] : memref<4x8xf32, #tpu.memory_space<vmem>>, vector<1x8xf32>
    %c1 = arith.constant 1 : index
    %c0_5 = arith.constant 0 : index
    %2 = vector.load %arg4[%c1, %c0_5] : memref<4x8xf32, #tpu.memory_space<vmem>>, vector<1x8xf32>
    %cst = arith.constant 0.000000e+00 : f32
    %3 = vector.broadcast %cst : f32 to vector<2x10x10x4xf32>
    %c0_6 = arith.constant 0 : index
    %c0_7 = arith.constant 0 : index
    %c0_8 = arith.constant 0 : index
    %c0_9 = arith.constant 0 : index
    %4 = vector.load %arg6[%c0_6, %c0_7, %c0_8, %c0_9] : memref<2x10x10x4xf32, #tpu.memory_space<vmem>>, vector<2x10x10x4xf32>
    tpu.vector_store %arg6[%c0_6, %c0_7, %c0_8, %c0_9], %3 {strides = array<i32>} : memref<2x10x10x4xf32, #tpu.memory_space<vmem>>, vector<2x10x10x4xf32>,
    %c0_10 = arith.constant 0 : index
    %c1_11 = arith.constant 1 : index
    %c1_12 = arith.constant 1 : index
    %c0_13 = arith.constant 0 : index
    %5 = vector.load %arg6[%c0_10, %c1_11, %c1_12, %c0_13] : memref<2x10x10x4xf32, #tpu.memory_space<vmem>>, vector<2x8x8x4xf32>
    tpu.vector_store %arg6[%c0_10, %c1_11, %c1_12, %c0_13], %0 {strides = array<i32>} : memref<2x10x10x4xf32, #tpu.memory_space<vmem>>, vector<2x8x8x4xf32>,
    %c0_14 = arith.constant 0 : index
    %c0_15 = arith.constant 0 : index
    %c0_16 = arith.constant 0 : index
    %c0_17 = arith.constant 0 : index
    %6 = vector.load %arg6[%c0_14, %c0_15, %c0_16, %c0_17] : memref<2x10x10x4xf32, #tpu.memory_space<vmem>>, vector<2x8x8x4xf32>
    %c0_18 = arith.constant 0 : index
    %c0_19 = arith.constant 0 : index
    %c1_20 = arith.constant 1 : index
    %c0_21 = arith.constant 0 : index
    %7 = vector.load %arg6[%c0_18, %c0_19, %c1_20, %c0_21] : memref<2x10x10x4xf32, #tpu.memory_space<vmem>>, vector<2x8x8x4xf32>
    %c0_22 = arith.constant 0 : index
    %c0_23 = arith.constant 0 : index
    %c2 = arith.constant 2 : index
    %c0_24 = arith.constant 0 : index
    %8 = vector.load %arg6[%c0_22, %c0_23, %c2, %c0_24] : memref<2x10x10x4xf32, #tpu.memory_space<vmem>>, vector<2x8x8x4xf32>
    %c0_25 = arith.constant 0 : index
    %c1_26 = arith.constant 1 : index
    %c0_27 = arith.constant 0 : index
    %c0_28 = arith.constant 0 : index
    %9 = vector.load %arg6[%c0_25, %c1_26, %c0_27, %c0_28] : memref<2x10x10x4xf32, #tpu.memory_space<vmem>>, vector<2x8x8x4xf32>
    %c0_29 = arith.constant 0 : index
    %c1_30 = arith.constant 1 : index
    %c1_31 = arith.constant 1 : index
    %c0_32 = arith.constant 0 : index
    %10 = vector.load %arg6[%c0_29, %c1_30, %c1_31, %c0_32] : memref<2x10x10x4xf32, #tpu.memory_space<vmem>>, vector<2x8x8x4xf32>
    %c0_33 = arith.constant 0 : index
    %c1_34 = arith.constant 1 : index
    %c2_35 = arith.constant 2 : index
    %c0_36 = arith.constant 0 : index
    %11 = vector.load %arg6[%c0_33, %c1_34, %c2_35, %c0_36] : memref<2x10x10x4xf32, #tpu.memory_space<vmem>>, vector<2x8x8x4xf32>
    %c0_37 = arith.constant 0 : index
    %c2_38 = arith.constant 2 : index
    %c0_39 = arith.constant 0 : index
    %c0_40 = arith.constant 0 : index
    %12 = vector.load %arg6[%c0_37, %c2_38, %c0_39, %c0_40] : memref<2x10x10x4xf32, #tpu.memory_space<vmem>>, vector<2x8x8x4xf32>
    %c0_41 = arith.constant 0 : index
    %c2_42 = arith.constant 2 : index
    %c1_43 = arith.constant 1 : index
    %c0_44 = arith.constant 0 : index
    %13 = vector.load %arg6[%c0_41, %c2_42, %c1_43, %c0_44] : memref<2x10x10x4xf32, #tpu.memory_space<vmem>>, vector<2x8x8x4xf32>
    %c0_45 = arith.constant 0 : index
    %c2_46 = arith.constant 2 : index
    %c2_47 = arith.constant 2 : index
    %c0_48 = arith.constant 0 : index
    %14 = vector.load %arg6[%c0_45, %c2_46, %c2_47, %c0_48] : memref<2x10x10x4xf32, #tpu.memory_space<vmem>>, vector<2x8x8x4xf32>
    %15 = tpu.concatenate %6, %7, %8, %9, %10, %11, %12, %13, %14 in 3 : vector<2x8x8x4xf32>, vector<2x8x8x4xf32>, vector<2x8x8x4xf32>, vector<2x8x8x4xf32>, vector<2x8x8x4xf32>, vector<2x8x8x4xf32>, vector<2x8x8x4xf32>, vector<2x8x8x4xf32>, vector<2x8x8x4xf32> -> vector<2x8x8x36xf32>
    %16 = vector.shape_cast %15 : vector<2x8x8x36xf32> to vector<128x36xf32>
    %c0_49 = arith.constant 0 : index
    %c0_50 = arith.constant 0 : index
    %17 = vector.load %arg2[%c0_49, %c0_50] : memref<36x8xf32, #tpu.memory_space<vmem>>, vector<36x8xf32>
    %cst_51 = arith.constant dense<0.000000e+00> : vector<128x8xf32>
    %18 = tpu.matmul %16, %17, %cst_51 {dimension_numbers = #tpu.dot_dimension_numbers<[1], [0], [0], [1], [0, 0, 1, 1], [], []>} : vector<128x36xf32>, vector<36x8xf32>, vector<128x8xf32> -> vector<128x8xf32>
    %19 = vector.broadcast %1 : vector<1x8xf32> to vector<128x8xf32>
    %20 = arith.mulf %18, %19 : vector<128x8xf32>
    %21 = vector.broadcast %2 : vector<1x8xf32> to vector<128x8xf32>
    %22 = arith.addf %20, %21 : vector<128x8xf32>
    %cst_52 = arith.constant 0.000000e+00 : f32
    %23 = vector.broadcast %cst_52 : f32 to vector<128x8xf32>
    %24 = arith.maximumf %22, %23 : vector<128x8xf32>
    %25 = vector.shape_cast %24 : vector<128x8xf32> to vector<2x8x8x8xf32>
    %c2_53 = arith.constant 2 : index
    %c0_54 = arith.constant 0 : index
    %26 = vector.load %arg4[%c2_53, %c0_54] : memref<4x8xf32, #tpu.memory_space<vmem>>, vector<1x8xf32>
    %c3 = arith.constant 3 : index
    %c0_55 = arith.constant 0 : index
    %27 = vector.load %arg4[%c3, %c0_55] : memref<4x8xf32, #tpu.memory_space<vmem>>, vector<1x8xf32>
    %cst_56 = arith.constant 0.000000e+00 : f32
    %28 = vector.broadcast %cst_56 : f32 to vector<2x10x10x8xf32>
    %c0_57 = arith.constant 0 : index
    %c0_58 = arith.constant 0 : index
    %c0_59 = arith.constant 0 : index
    %c0_60 = arith.constant 0 : index
    %29 = vector.load %arg7[%c0_57, %c0_58, %c0_59, %c0_60] : memref<2x10x10x8xf32, #tpu.memory_space<vmem>>, vector<2x10x10x8xf32>
    tpu.vector_store %arg7[%c0_57, %c0_58, %c0_59, %c0_60], %28 {strides = array<i32>} : memref<2x10x10x8xf32, #tpu.memory_space<vmem>>, vector<2x10x10x8xf32>,
    %c0_61 = arith.constant 0 : index
    %c1_62 = arith.constant 1 : index
    %c1_63 = arith.constant 1 : index
    %c0_64 = arith.constant 0 : index
    %30 = vector.load %arg7[%c0_61, %c1_62, %c1_63, %c0_64] : memref<2x10x10x8xf32, #tpu.memory_space<vmem>>, vector<2x8x8x8xf32>
    tpu.vector_store %arg7[%c0_61, %c1_62, %c1_63, %c0_64], %25 {strides = array<i32>} : memref<2x10x10x8xf32, #tpu.memory_space<vmem>>, vector<2x8x8x8xf32>,
    %c0_65 = arith.constant 0 : index
    %c0_66 = arith.constant 0 : index
    %c0_67 = arith.constant 0 : index
    %c0_68 = arith.constant 0 : index
    %31 = vector.load %arg7[%c0_65, %c0_66, %c0_67, %c0_68] : memref<2x10x10x8xf32, #tpu.memory_space<vmem>>, vector<2x8x8x8xf32>
    %c0_69 = arith.constant 0 : index
    %c0_70 = arith.constant 0 : index
    %c1_71 = arith.constant 1 : index
    %c0_72 = arith.constant 0 : index
    %32 = vector.load %arg7[%c0_69, %c0_70, %c1_71, %c0_72] : memref<2x10x10x8xf32, #tpu.memory_space<vmem>>, vector<2x8x8x8xf32>
    %c0_73 = arith.constant 0 : index
    %c0_74 = arith.constant 0 : index
    %c2_75 = arith.constant 2 : index
    %c0_76 = arith.constant 0 : index
    %33 = vector.load %arg7[%c0_73, %c0_74, %c2_75, %c0_76] : memref<2x10x10x8xf32, #tpu.memory_space<vmem>>, vector<2x8x8x8xf32>
    %c0_77 = arith.constant 0 : index
    %c1_78 = arith.constant 1 : index
    %c0_79 = arith.constant 0 : index
    %c0_80 = arith.constant 0 : index
    %34 = vector.load %arg7[%c0_77, %c1_78, %c0_79, %c0_80] : memref<2x10x10x8xf32, #tpu.memory_space<vmem>>, vector<2x8x8x8xf32>
    %c0_81 = arith.constant 0 : index
    %c1_82 = arith.constant 1 : index
    %c1_83 = arith.constant 1 : index
    %c0_84 = arith.constant 0 : index
    %35 = vector.load %arg7[%c0_81, %c1_82, %c1_83, %c0_84] : memref<2x10x10x8xf32, #tpu.memory_space<vmem>>, vector<2x8x8x8xf32>
    %c0_85 = arith.constant 0 : index
    %c1_86 = arith.constant 1 : index
    %c2_87 = arith.constant 2 : index
    %c0_88 = arith.constant 0 : index
    %36 = vector.load %arg7[%c0_85, %c1_86, %c2_87, %c0_88] : memref<2x10x10x8xf32, #tpu.memory_space<vmem>>, vector<2x8x8x8xf32>
    %c0_89 = arith.constant 0 : index
    %c2_90 = arith.constant 2 : index
    %c0_91 = arith.constant 0 : index
    %c0_92 = arith.constant 0 : index
    %37 = vector.load %arg7[%c0_89, %c2_90, %c0_91, %c0_92] : memref<2x10x10x8xf32, #tpu.memory_space<vmem>>, vector<2x8x8x8xf32>
    %c0_93 = arith.constant 0 : index
    %c2_94 = arith.constant 2 : index
    %c1_95 = arith.constant 1 : index
    %c0_96 = arith.constant 0 : index
    %38 = vector.load %arg7[%c0_93, %c2_94, %c1_95, %c0_96] : memref<2x10x10x8xf32, #tpu.memory_space<vmem>>, vector<2x8x8x8xf32>
    %c0_97 = arith.constant 0 : index
    %c2_98 = arith.constant 2 : index
    %c2_99 = arith.constant 2 : index
    %c0_100 = arith.constant 0 : index
    %39 = vector.load %arg7[%c0_97, %c2_98, %c2_99, %c0_100] : memref<2x10x10x8xf32, #tpu.memory_space<vmem>>, vector<2x8x8x8xf32>
    %40 = tpu.concatenate %31, %32, %33, %34, %35, %36, %37, %38, %39 in 3 : vector<2x8x8x8xf32>, vector<2x8x8x8xf32>, vector<2x8x8x8xf32>, vector<2x8x8x8xf32>, vector<2x8x8x8xf32>, vector<2x8x8x8xf32>, vector<2x8x8x8xf32>, vector<2x8x8x8xf32>, vector<2x8x8x8xf32> -> vector<2x8x8x72xf32>
    %41 = vector.shape_cast %40 : vector<2x8x8x72xf32> to vector<128x72xf32>
    %c0_101 = arith.constant 0 : index
    %c0_102 = arith.constant 0 : index
    %42 = vector.load %arg3[%c0_101, %c0_102] : memref<72x8xf32, #tpu.memory_space<vmem>>, vector<72x8xf32>
    %cst_103 = arith.constant dense<0.000000e+00> : vector<128x8xf32>
    %43 = tpu.matmul %41, %42, %cst_103 {dimension_numbers = #tpu.dot_dimension_numbers<[1], [0], [0], [1], [0, 0, 1, 1], [], []>} : vector<128x72xf32>, vector<72x8xf32>, vector<128x8xf32> -> vector<128x8xf32>
    %44 = vector.broadcast %26 : vector<1x8xf32> to vector<128x8xf32>
    %45 = arith.mulf %43, %44 : vector<128x8xf32>
    %46 = vector.broadcast %27 : vector<1x8xf32> to vector<128x8xf32>
    %47 = arith.addf %45, %46 : vector<128x8xf32>
    %cst_104 = arith.constant 0.000000e+00 : f32
    %48 = vector.broadcast %cst_104 : f32 to vector<128x8xf32>
    %49 = arith.maximumf %47, %48 : vector<128x8xf32>
    %50 = tpu.transpose %49, [1, 0] : vector<128x8xf32> -> vector<8x128xf32>
    %c0_105 = arith.constant 0 : index
    %c0_106 = arith.constant 0 : index
    %51 = vector.load %arg5[%c0_105, %c0_106] : memref<8x128xf32, #tpu.memory_space<vmem>>, vector<8x128xf32>
    tpu.vector_store %arg5[%c0_105, %c0_106], %50 {strides = array<i32>} : memref<8x128xf32, #tpu.memory_space<vmem>>, vector<8x128xf32>,
    return
  }
  func.func @transform_0(%arg0: i32) -> (i32, i32, i32, i32) {
    %c0_i32 = arith.constant 0 : i32
    %c0_i32_0 = arith.constant 0 : i32
    %c0_i32_1 = arith.constant 0 : i32
    %c0_i32_2 = arith.constant 0 : i32
    %c0_i32_3 = arith.constant 0 : i32
    return %c0_i32, %c0_i32_0, %c0_i32_1, %c0_i32_2 : i32, i32, i32, i32
  }
  func.func @transform_1(%arg0: i32) -> (i32, i32) {
    %c0_i32 = arith.constant 0 : i32
    %c0_i32_0 = arith.constant 0 : i32
    %c0_i32_1 = arith.constant 0 : i32
    return %c0_i32, %c0_i32_0 : i32, i32
  }
  func.func @transform_2(%arg0: i32) -> (i32, i32) {
    %c0_i32 = arith.constant 0 : i32
    %c0_i32_0 = arith.constant 0 : i32
    %c0_i32_1 = arith.constant 0 : i32
    return %c0_i32, %c0_i32_0 : i32, i32
  }
  func.func @transform_3(%arg0: i32) -> (i32, i32) {
    %c0_i32 = arith.constant 0 : i32
    %c0_i32_0 = arith.constant 0 : i32
    %c0_i32_1 = arith.constant 0 : i32
    return %c0_i32, %c0_i32_0 : i32, i32
  }
  func.func @transform_4(%arg0: i32) -> (i32, i32) {
    %c0_i32 = arith.constant 0 : i32
    %c0_i32_0 = arith.constant 0 : i32
    %c0_i32_1 = arith.constant 0 : i32
    return %c0_i32, %c0_i32_0 : i32, i32
  }
}

</mosaic_0001>

<llo_original>
// kernel: down_forward.1
$region0: #{down_forward.1}
  #allocation0 [shape = 'u32[]', space=smem, size = 0x4, offset = 0x4, fixed_abs, tag = 'smem constant byte address 0x4 - core index']
  #allocation1 [shape = 'u32[144,128]{1,0:T(1,128)}', space=vmem, size = 0x12000, scoped, tag = 'internal scratch']
  #allocation2 [shape = 'f32[2,10,10,4]{3,2,1,0:T(8,128)}', space=vmem, size = 0x28000, scoped, tag = 'scratch operand']
  #allocation3 [shape = 'f32[2,10,10,8]{3,2,1,0:T(8,128)}', space=vmem, size = 0x28000, scoped, tag = 'scratch operand']
  %s0 = inlined_call_operand.vmem [shape: f32[2,8,8,4], index: 0, kind: input, shape index: {}]
  %s1 = inlined_call_operand.vmem [shape: f32[36,8], index: 1, kind: input, shape index: {}]
  %s2 = inlined_call_operand.vmem [shape: f32[72,8], index: 2, kind: input, shape index: {}]
  %s3 = inlined_call_operand.vmem [shape: f32[4,8], index: 3, kind: input, shape index: {}]
  %s4 = inlined_call_operand.vmem [shape: f32[8,128], index: 4, kind: output, shape index: {}]
  %s5 = sld [smem:[#allocation0]]
  $region26: #{down_forward.1} parent=0
    _
  %s7 = ssub.s32 1, %s5
  %s8 = scalar_select 0, %s7, %s5
  // Predicated region
  $region2: #{down_forward.1} parent=0 // pred_check
    _
  $region3: #{down_forward.1} parent=0 // pred_check_branch
    %10 = sbr.rel (0) target = $region5
  $region4: #{down_forward.1} parent=0 // pred_region
    _
  $region5: #{down_forward.1} parent=0 // pred_fallthru
    _
  // Predicated region
  $region6: #{down_forward.1} parent=0 // pred_check
    _
  $region7: #{down_forward.1} parent=0 // pred_check_branch
    %12 = sbr.rel (0) target = $region9
  $region8: #{down_forward.1} parent=0 // pred_region
    _
  $region9: #{down_forward.1} parent=0 // pred_fallthru
    _
  // Predicated region
  $region10: #{down_forward.1} parent=0 // pred_check
    _
  $region11: #{down_forward.1} parent=0 // pred_check_branch
    %14 = sbr.rel (0) target = $region13
  $region12: #{down_forward.1} parent=0 // pred_region
    _
  $region13: #{down_forward.1} parent=0 // pred_fallthru
    _
  // Predicated region
  $region14: #{down_forward.1} parent=0 // pred_check
    _
  $region15: #{down_forward.1} parent=0 // pred_check_branch
    %16 = sbr.rel (0) target = $region17
  $region16: #{down_forward.1} parent=0 // pred_region
    _
  $region17: #{down_forward.1} parent=0 // pred_fallthru
    _
  %v17 = vld [vmem:[%s0] sm:$0xff]
  %v18 = vld [vmem:[%s0 + $0x8] sm:$0xff]
  %v19 = vld [vmem:[%s0 + $0x10] sm:$0xff]
  %v20 = vld [vmem:[%s0 + $0x18] sm:$0xff]
  %v21 = vld [vmem:[%s0 + $0x20] sm:$0xff]
  %v22 = vld [vmem:[%s0 + $0x28] sm:$0xff]
  %v23 = vld [vmem:[%s0 + $0x30] sm:$0xff]
  %v24 = vld [vmem:[%s0 + $0x38] sm:$0xff]
  %v25 = vld [vmem:[%s0 + $0x40] sm:$0xff]
  %v26 = vld [vmem:[%s0 + $0x48] sm:$0xff]
  %v27 = vld [vmem:[%s0 + $0x50] sm:$0xff]
  %v28 = vld [vmem:[%s0 + $0x58] sm:$0xff]
  %v29 = vld [vmem:[%s0 + $0x60] sm:$0xff]
  %v30 = vld [vmem:[%s0 + $0x68] sm:$0xff]
  %v31 = vld [vmem:[%s0 + $0x70] sm:$0xff]
  %v32 = vld [vmem:[%s0 + $0x78] sm:$0xff]
  %v33 = vld [vmem:[%s3] sm:$0x1]
  %v34 = vld [vmem:[%s3 + $0x1] sm:$0x1]
  %vm35 = vcmask 31744
  %36 = vst.msk [vmem:[#allocation2] sm:$0xff] %vm35, 0.0
  %vm37 = vcmask 25600
  %38 = vst.msk [vmem:[#allocation2 + $0x8] sm:$0x3] %vm37, 0.0
  %39 = vst.msk [vmem:[#allocation2 + $0x10] sm:$0xff] %vm35, 0.0
  %40 = vst.msk [vmem:[#allocation2 + $0x18] sm:$0x3] %vm37, 0.0
  %41 = vst.msk [vmem:[#allocation2 + $0x20] sm:$0xff] %vm35, 0.0
  %42 = vst.msk [vmem:[#allocation2 + $0x28] sm:$0x3] %vm37, 0.0
  %43 = vst.msk [vmem:[#allocation2 + $0x30] sm:$0xff] %vm35, 0.0
  %44 = vst.msk [vmem:[#allocation2 + $0x38] sm:$0x3] %vm37, 0.0
  %45 = vst.msk [vmem:[#allocation2 + $0x40] sm:$0xff] %vm35, 0.0
  %46 = vst.msk [vmem:[#allocation2 + $0x48] sm:$0x3] %vm37, 0.0
  %47 = vst.msk [vmem:[#allocation2 + $0x50] sm:$0xff] %vm35, 0.0
  %48 = vst.msk [vmem:[#allocation2 + $0x58] sm:$0x3] %vm37, 0.0
  %49 = vst.msk [vmem:[#allocation2 + $0x60] sm:$0xff] %vm35, 0.0
  %50 = vst.msk [vmem:[#allocation2 + $0x68] sm:$0x3] %vm37, 0.0
  %51 = vst.msk [vmem:[#allocation2 + $0x70] sm:$0xff] %vm35, 0.0
  %52 = vst.msk [vmem:[#allocation2 + $0x78] sm:$0x3] %vm37, 0.0
  %53 = vst.msk [vmem:[#allocation2 + $0x80] sm:$0xff] %vm35, 0.0
  %54 = vst.msk [vmem:[#allocation2 + $0x88] sm:$0x3] %vm37, 0.0
  %55 = vst.msk [vmem:[#allocation2 + $0x90] sm:$0xff] %vm35, 0.0
  %56 = vst.msk [vmem:[#allocation2 + $0x98] sm:$0x3] %vm37, 0.0
  %57 = vst.msk [vmem:[#allocation2 + $0xa0] sm:$0xff] %vm35, 0.0
  %58 = vst.msk [vmem:[#allocation2 + $0xa8] sm:$0x3] %vm37, 0.0
  %59 = vst.msk [vmem:[#allocation2 + $0xb0] sm:$0xff] %vm35, 0.0
  %60 = vst.msk [vmem:[#allocation2 + $0xb8] sm:$0x3] %vm37, 0.0
  %61 = vst.msk [vmem:[#allocation2 + $0xc0] sm:$0xff] %vm35, 0.0
  %62 = vst.msk [vmem:[#allocation2 + $0xc8] sm:$0x3] %vm37, 0.0
  %63 = vst.msk [vmem:[#allocation2 + $0xd0] sm:$0xff] %vm35, 0.0
  %64 = vst.msk [vmem:[#allocation2 + $0xd8] sm:$0x3] %vm37, 0.0
  %65 = vst.msk [vmem:[#allocation2 + $0xe0] sm:$0xff] %vm35, 0.0
  %66 = vst.msk [vmem:[#allocation2 + $0xe8] sm:$0x3] %vm37, 0.0
  %67 = vst.msk [vmem:[#allocation2 + $0xf0] sm:$0xff] %vm35, 0.0
  %68 = vst.msk [vmem:[#allocation2 + $0xf8] sm:$0x3] %vm37, 0.0
  %69 = vst.msk [vmem:[#allocation2 + $0x100] sm:$0xff] %vm35, 0.0
  %70 = vst.msk [vmem:[#allocation2 + $0x108] sm:$0x3] %vm37, 0.0
  %71 = vst.msk [vmem:[#allocation2 + $0x110] sm:$0xff] %vm35, 0.0
  %72 = vst.msk [vmem:[#allocation2 + $0x118] sm:$0x3] %vm37, 0.0
  %73 = vst.msk [vmem:[#allocation2 + $0x120] sm:$0xff] %vm35, 0.0
  %74 = vst.msk [vmem:[#allocation2 + $0x128] sm:$0x3] %vm37, 0.0
  %75 = vst.msk [vmem:[#allocation2 + $0x130] sm:$0xff] %vm35, 0.0
  %76 = vst.msk [vmem:[#allocation2 + $0x138] sm:$0x3] %vm37, 0.0
  %s77 = scalar_lea.vmem [#allocation2], 16
  %78 = vst.msk [vmem:[%s77 + $0x1] sm:$0xff] %vm35, %v17
  %79 = vst.msk [vmem:[%s77 + $0x11] sm:$0xff] %vm35, %v18
  %80 = vst.msk [vmem:[%s77 + $0x21] sm:$0xff] %vm35, %v19
  %81 = vst.msk [vmem:[%s77 + $0x31] sm:$0xff] %vm35, %v20
  %82 = vst.msk [vmem:[%s77 + $0x41] sm:$0xff] %vm35, %v21
  %83 = vst.msk [vmem:[%s77 + $0x51] sm:$0xff] %vm35, %v22
  %84 = vst.msk [vmem:[%s77 + $0x61] sm:$0xff] %vm35, %v23
  %85 = vst.msk [vmem:[%s77 + $0x71] sm:$0xff] %vm35, %v24
  %86 = vst.msk [vmem:[%s77 + $0xa1] sm:$0xff] %vm35, %v25
  %87 = vst.msk [vmem:[%s77 + $0xb1] sm:$0xff] %vm35, %v26
  %88 = vst.msk [vmem:[%s77 + $0xc1] sm:$0xff] %vm35, %v27
  %89 = vst.msk [vmem:[%s77 + $0xd1] sm:$0xff] %vm35, %v28
  %90 = vst.msk [vmem:[%s77 + $0xe1] sm:$0xff] %vm35, %v29
  %91 = vst.msk [vmem:[%s77 + $0xf1] sm:$0xff] %vm35, %v30
  %92 = vst.msk [vmem:[%s77 + $0x101] sm:$0xff] %vm35, %v31
  %93 = vst.msk [vmem:[%s77 + $0x111] sm:$0xff] %vm35, %v32
  %v94 = vld [vmem:[#allocation2] sm:$0xff]
  %v95 = vld [vmem:[#allocation2 + $0x10] sm:$0xff]
  %v96 = vld [vmem:[#allocation2 + $0x20] sm:$0xff]
  %v97 = vld [vmem:[#allocation2 + $0x30] sm:$0xff]
  %v98 = vld [vmem:[#allocation2 + $0x40] sm:$0xff]
  %v99 = vld [vmem:[#allocation2 + $0x50] sm:$0xff]
  %v100 = vld [vmem:[#allocation2 + $0x60] sm:$0xff]
  %v101 = vld [vmem:[#allocation2 + $0x70] sm:$0xff]
  %v102 = vld [vmem:[#allocation2 + $0xa0] sm:$0xff]
  %v103 = vld [vmem:[#allocation2 + $0xb0] sm:$0xff]
  %v104 = vld [vmem:[#allocation2 + $0xc0] sm:$0xff]
  %v105 = vld [vmem:[#allocation2 + $0xd0] sm:$0xff]
  %v106 = vld [vmem:[#allocation2 + $0xe0] sm:$0xff]
  %v107 = vld [vmem:[#allocation2 + $0xf0] sm:$0xff]
  %v108 = vld [vmem:[#allocation2 + $0x100] sm:$0xff]
  %v109 = vld [vmem:[#allocation2 + $0x110] sm:$0xff]
  %v110 = vld [vmem:[#allocation2 + $0x1] sm:$0xff]
  %v111 = vld [vmem:[#allocation2 + $0x11] sm:$0xff]
  %v112 = vld [vmem:[#allocation2 + $0x21] sm:$0xff]
  %v113 = vld [vmem:[#allocation2 + $0x31] sm:$0xff]
  %v114 = vld [vmem:[#allocation2 + $0x41] sm:$0xff]
  %v115 = vld [vmem:[#allocation2 + $0x51] sm:$0xff]
  %v116 = vld [vmem:[#allocation2 + $0x61] sm:$0xff]
  %v117 = vld [vmem:[#allocation2 + $0x71] sm:$0xff]
  %v118 = vld [vmem:[#allocation2 + $0xa1] sm:$0xff]
  %v119 = vld [vmem:[#allocation2 + $0xb1] sm:$0xff]
  %v120 = vld [vmem:[#allocation2 + $0xc1] sm:$0xff]
  %v121 = vld [vmem:[#allocation2 + $0xd1] sm:$0xff]
  %v122 = vld [vmem:[#allocation2 + $0xe1] sm:$0xff]
  %v123 = vld [vmem:[#allocation2 + $0xf1] sm:$0xff]
  %v124 = vld [vmem:[#allocation2 + $0x101] sm:$0xff]
  %v125 = vld [vmem:[#allocation2 + $0x111] sm:$0xff]
  %v126 = vld [vmem:[#allocation2 + $0x2] sm:$0xff]
  %v127 = vld [vmem:[#allocation2 + $0x12] sm:$0xff]
  %v128 = vld [vmem:[#allocation2 + $0x22] sm:$0xff]
  %v129 = vld [vmem:[#allocation2 + $0x32] sm:$0xff]
  %v130 = vld [vmem:[#allocation2 + $0x42] sm:$0xff]
  %v131 = vld [vmem:[#allocation2 + $0x52] sm:$0xff]
  %v132 = vld [vmem:[#allocation2 + $0x62] sm:$0xff]
  %v133 = vld [vmem:[#allocation2 + $0x72] sm:$0xff]
  %v134 = vld [vmem:[#allocation2 + $0xa2] sm:$0xff]
  %v135 = vld [vmem:[#allocation2 + $0xb2] sm:$0xff]
  %v136 = vld [vmem:[#allocation2 + $0xc2] sm:$0xff]
  %v137 = vld [vmem:[#allocation2 + $0xd2] sm:$0xff]
  %v138 = vld [vmem:[#allocation2 + $0xe2] sm:$0xff]
  %v139 = vld [vmem:[#allocation2 + $0xf2] sm:$0xff]
  %v140 = vld [vmem:[#allocation2 + $0x102] sm:$0xff]
  %v141 = vld [vmem:[#allocation2 + $0x112] sm:$0xff]
  %v142 = vld [vmem:[%s77] sm:$0xff]
  %v143 = vld [vmem:[%s77 + $0x10] sm:$0xff]
  %v144 = vld [vmem:[%s77 + $0x20] sm:$0xff]
  %v145 = vld [vmem:[%s77 + $0x30] sm:$0xff]
  %v146 = vld [vmem:[%s77 + $0x40] sm:$0xff]
  %v147 = vld [vmem:[%s77 + $0x50] sm:$0xff]
  %v148 = vld [vmem:[%s77 + $0x60] sm:$0xff]
  %v149 = vld [vmem:[%s77 + $0x70] sm:$0xff]
  %v150 = vld [vmem:[%s77 + $0xa0] sm:$0xff]
  %v151 = vld [vmem:[%s77 + $0xb0] sm:$0xff]
  %v152 = vld [vmem:[%s77 + $0xc0] sm:$0xff]
  %v153 = vld [vmem:[%s77 + $0xd0] sm:$0xff]
  %v154 = vld [vmem:[%s77 + $0xe0] sm:$0xff]
  %v155 = vld [vmem:[%s77 + $0xf0] sm:$0xff]
  %v156 = vld [vmem:[%s77 + $0x100] sm:$0xff]
  %v157 = vld [vmem:[%s77 + $0x110] sm:$0xff]
  %v158 = vld [vmem:[%s77 + $0x1] sm:$0xff]
  %v159 = vld [vmem:[%s77 + $0x11] sm:$0xff]
  %v160 = vld [vmem:[%s77 + $0x21] sm:$0xff]
  %v161 = vld [vmem:[%s77 + $0x31] sm:$0xff]
  %v162 = vld [vmem:[%s77 + $0x41] sm:$0xff]
  %v163 = vld [vmem:[%s77 + $0x51] sm:$0xff]
  %v164 = vld [vmem:[%s77 + $0x61] sm:$0xff]
  %v165 = vld [vmem:[%s77 + $0x71] sm:$0xff]
  %v166 = vld [vmem:[%s77 + $0xa1] sm:$0xff]
  %v167 = vld [vmem:[%s77 + $0xb1] sm:$0xff]
  %v168 = vld [vmem:[%s77 + $0xc1] sm:$0xff]
  %v169 = vld [vmem:[%s77 + $0xd1] sm:$0xff]
  %v170 = vld [vmem:[%s77 + $0xe1] sm:$0xff]
  %v171 = vld [vmem:[%s77 + $0xf1] sm:$0xff]
  %v172 = vld [vmem:[%s77 + $0x101] sm:$0xff]
  %v173 = vld [vmem:[%s77 + $0x111] sm:$0xff]
  %v174 = vld [vmem:[%s77 + $0x2] sm:$0xff]
  %v175 = vld [vmem:[%s77 + $0x12] sm:$0xff]
  %v176 = vld [vmem:[%s77 + $0x22] sm:$0xff]
  %v177 = vld [vmem:[%s77 + $0x32] sm:$0xff]
  %v178 = vld [vmem:[%s77 + $0x42] sm:$0xff]
  %v179 = vld [vmem:[%s77 + $0x52] sm:$0xff]
  %v180 = vld [vmem:[%s77 + $0x62] sm:$0xff]
  %v181 = vld [vmem:[%s77 + $0x72] sm:$0xff]
  %v182 = vld [vmem:[%s77 + $0xa2] sm:$0xff]
  %v183 = vld [vmem:[%s77 + $0xb2] sm:$0xff]
  %v184 = vld [vmem:[%s77 + $0xc2] sm:$0xff]
  %v185 = vld [vmem:[%s77 + $0xd2] sm:$0xff]
  %v186 = vld [vmem:[%s77 + $0xe2] sm:$0xff]
  %v187 = vld [vmem:[%s77 + $0xf2] sm:$0xff]
  %v188 = vld [vmem:[%s77 + $0x102] sm:$0xff]
  %v189 = vld [vmem:[%s77 + $0x112] sm:$0xff]
  %s190 = scalar_lea.vmem [#allocation2], 32
  %v191 = vld [vmem:[%s190] sm:$0xff]
  %v192 = vld [vmem:[%s190 + $0x10] sm:$0xff]
  %v193 = vld [vmem:[%s190 + $0x20] sm:$0xff]
  %v194 = vld [vmem:[%s190 + $0x30] sm:$0xff]
  %v195 = vld [vmem:[%s190 + $0x40] sm:$0xff]
  %v196 = vld [vmem:[%s190 + $0x50] sm:$0xff]
  %v197 = vld [vmem:[%s190 + $0x60] sm:$0xff]
  %v198 = vld [vmem:[%s190 + $0x70] sm:$0xff]
  %v199 = vld [vmem:[%s190 + $0xa0] sm:$0xff]
  %v200 = vld [vmem:[%s190 + $0xb0] sm:$0xff]
  %v201 = vld [vmem:[%s190 + $0xc0] sm:$0xff]
  %v202 = vld [vmem:[%s190 + $0xd0] sm:$0xff]
  %v203 = vld [vmem:[%s190 + $0xe0] sm:$0xff]
  %v204 = vld [vmem:[%s190 + $0xf0] sm:$0xff]
  %v205 = vld [vmem:[%s190 + $0x100] sm:$0xff]
  %v206 = vld [vmem:[%s190 + $0x110] sm:$0xff]
  %v207 = vld [vmem:[%s190 + $0x1] sm:$0xff]
  %v208 = vld [vmem:[%s190 + $0x11] sm:$0xff]
  %v209 = vld [vmem:[%s190 + $0x21] sm:$0xff]
  %v210 = vld [vmem:[%s190 + $0x31] sm:$0xff]
  %v211 = vld [vmem:[%s190 + $0x41] sm:$0xff]
  %v212 = vld [vmem:[%s190 + $0x51] sm:$0xff]
  %v213 = vld [vmem:[%s190 + $0x61] sm:$0xff]
  %v214 = vld [vmem:[%s190 + $0x71] sm:$0xff]
  %v215 = vld [vmem:[%s190 + $0xa1] sm:$0xff]
  %v216 = vld [vmem:[%s190 + $0xb1] sm:$0xff]
  %v217 = vld [vmem:[%s190 + $0xc1] sm:$0xff]
  %v218 = vld [vmem:[%s190 + $0xd1] sm:$0xff]
  %v219 = vld [vmem:[%s190 + $0xe1] sm:$0xff]
  %v220 = vld [vmem:[%s190 + $0xf1] sm:$0xff]
  %v221 = vld [vmem:[%s190 + $0x101] sm:$0xff]
  %v222 = vld [vmem:[%s190 + $0x111] sm:$0xff]
  %v223 = vld [vmem:[%s190 + $0x2] sm:$0xff]
  %v224 = vld [vmem:[%s190 + $0x12] sm:$0xff]
  %v225 = vld [vmem:[%s190 + $0x22] sm:$0xff]
  %v226 = vld [vmem:[%s190 + $0x32] sm:$0xff]
  %v227 = vld [vmem:[%s190 + $0x42] sm:$0xff]
  %v228 = vld [vmem:[%s190 + $0x52] sm:$0xff]
  %v229 = vld [vmem:[%s190 + $0x62] sm:$0xff]
  %v230 = vld [vmem:[%s190 + $0x72] sm:$0xff]
  %v231 = vld [vmem:[%s190 + $0xa2] sm:$0xff]
  %v232 = vld [vmem:[%s190 + $0xb2] sm:$0xff]
  %v233 = vld [vmem:[%s190 + $0xc2] sm:$0xff]
  %v234 = vld [vmem:[%s190 + $0xd2] sm:$0xff]
  %v235 = vld [vmem:[%s190 + $0xe2] sm:$0xff]
  %v236 = vld [vmem:[%s190 + $0xf2] sm:$0xff]
  %v237 = vld [vmem:[%s190 + $0x102] sm:$0xff]
  %v238 = vld [vmem:[%s190 + $0x112] sm:$0xff]
  %255 = vrot.lane.b32.xlu0 %v110, 4
  %v256 = vpop.permute.xlu0 %255
  %257 = vrot.lane.b32.xlu0 %v111, 4
  %v258 = vpop.permute.xlu0 %257
  %259 = vrot.lane.b32.xlu0 %v112, 4
  %v260 = vpop.permute.xlu0 %259
  %261 = vrot.lane.b32.xlu0 %v113, 4
  %v262 = vpop.permute.xlu0 %261
  %263 = vrot.lane.b32.xlu0 %v114, 4
  %v264 = vpop.permute.xlu0 %263
  %265 = vrot.lane.b32.xlu0 %v115, 4
  %v266 = vpop.permute.xlu0 %265
  %267 = vrot.lane.b32.xlu0 %v116, 4
  %v268 = vpop.permute.xlu0 %267
  %269 = vrot.lane.b32.xlu0 %v117, 4
  %v270 = vpop.permute.xlu0 %269
  %271 = vrot.lane.b32.xlu0 %v118, 4
  %v272 = vpop.permute.xlu0 %271
  %273 = vrot.lane.b32.xlu0 %v119, 4
  %v274 = vpop.permute.xlu0 %273
  %275 = vrot.lane.b32.xlu0 %v120, 4
  %v276 = vpop.permute.xlu0 %275
  %277 = vrot.lane.b32.xlu0 %v121, 4
  %v278 = vpop.permute.xlu0 %277
  %279 = vrot.lane.b32.xlu0 %v122, 4
  %v280 = vpop.permute.xlu0 %279
  %281 = vrot.lane.b32.xlu0 %v123, 4
  %v282 = vpop.permute.xlu0 %281
  %283 = vrot.lane.b32.xlu0 %v124, 4
  %v284 = vpop.permute.xlu0 %283
  %285 = vrot.lane.b32.xlu0 %v125, 4
  %v286 = vpop.permute.xlu0 %285
  %319 = vrot.lane.b32.xlu0 %v126, 8
  %v320 = vpop.permute.xlu0 %319
  %321 = vrot.lane.b32.xlu0 %v127, 8
  %v322 = vpop.permute.xlu0 %321
  %323 = vrot.lane.b32.xlu0 %v128, 8
  %v324 = vpop.permute.xlu0 %323
  %325 = vrot.lane.b32.xlu0 %v129, 8
  %v326 = vpop.permute.xlu0 %325
  %327 = vrot.lane.b32.xlu0 %v130, 8
  %v328 = vpop.permute.xlu0 %327
  %329 = vrot.lane.b32.xlu0 %v131, 8
  %v330 = vpop.permute.xlu0 %329
  %331 = vrot.lane.b32.xlu0 %v132, 8
  %v332 = vpop.permute.xlu0 %331
  %333 = vrot.lane.b32.xlu0 %v133, 8
  %v334 = vpop.permute.xlu0 %333
  %335 = vrot.lane.b32.xlu0 %v134, 8
  %v336 = vpop.permute.xlu0 %335
  %337 = vrot.lane.b32.xlu0 %v135, 8
  %v338 = vpop.permute.xlu0 %337
  %339 = vrot.lane.b32.xlu0 %v136, 8
  %v340 = vpop.permute.xlu0 %339
  %341 = vrot.lane.b32.xlu0 %v137, 8
  %v342 = vpop.permute.xlu0 %341
  %343 = vrot.lane.b32.xlu0 %v138, 8
  %v344 = vpop.permute.xlu0 %343
  %345 = vrot.lane.b32.xlu0 %v139, 8
  %v346 = vpop.permute.xlu0 %345
  %347 = vrot.lane.b32.xlu0 %v140, 8
  %v348 = vpop.permute.xlu0 %347
  %349 = vrot.lane.b32.xlu0 %v141, 8
  %v350 = vpop.permute.xlu0 %349
  %383 = vrot.lane.b32.xlu0 %v142, 12
  %v384 = vpop.permute.xlu0 %383
  %385 = vrot.lane.b32.xlu0 %v143, 12
  %v386 = vpop.permute.xlu0 %385
  %387 = vrot.lane.b32.xlu0 %v144, 12
  %v388 = vpop.permute.xlu0 %387
  %389 = vrot.lane.b32.xlu0 %v145, 12
  %v390 = vpop.permute.xlu0 %389
  %391 = vrot.lane.b32.xlu0 %v146, 12
  %v392 = vpop.permute.xlu0 %391
  %393 = vrot.lane.b32.xlu0 %v147, 12
  %v394 = vpop.permute.xlu0 %393
  %395 = vrot.lane.b32.xlu0 %v148, 12
  %v396 = vpop.permute.xlu0 %395
  %397 = vrot.lane.b32.xlu0 %v149, 12
  %v398 = vpop.permute.xlu0 %397
  %399 = vrot.lane.b32.xlu0 %v150, 12
  %v400 = vpop.permute.xlu0 %399
  %401 = vrot.lane.b32.xlu0 %v151, 12
  %v402 = vpop.permute.xlu0 %401
  %403 = vrot.lane.b32.xlu0 %v152, 12
  %v404 = vpop.permute.xlu0 %403
  %405 = vrot.lane.b32.xlu0 %v153, 12
  %v406 = vpop.permute.xlu0 %405
  %407 = vrot.lane.b32.xlu0 %v154, 12
  %v408 = vpop.permute.xlu0 %407
  %409 = vrot.lane.b32.xlu0 %v155, 12
  %v410 = vpop.permute.xlu0 %409
  %411 = vrot.lane.b32.xlu0 %v156, 12
  %v412 = vpop.permute.xlu0 %411
  %413 = vrot.lane.b32.xlu0 %v157, 12
  %v414 = vpop.permute.xlu0 %413
  %447 = vrot.lane.b32.xlu0 %v158, 16
  %v448 = vpop.permute.xlu0 %447
  %449 = vrot.lane.b32.xlu0 %v159, 16
  %v450 = vpop.permute.xlu0 %449
  %451 = vrot.lane.b32.xlu0 %v160, 16
  %v452 = vpop.permute.xlu0 %451
  %453 = vrot.lane.b32.xlu0 %v161, 16
  %v454 = vpop.permute.xlu0 %453
  %455 = vrot.lane.b32.xlu0 %v162, 16
  %v456 = vpop.permute.xlu0 %455
  %457 = vrot.lane.b32.xlu0 %v163, 16
  %v458 = vpop.permute.xlu0 %457
  %459 = vrot.lane.b32.xlu0 %v164, 16
  %v460 = vpop.permute.xlu0 %459
  %461 = vrot.lane.b32.xlu0 %v165, 16
  %v462 = vpop.permute.xlu0 %461
  %463 = vrot.lane.b32.xlu0 %v166, 16
  %v464 = vpop.permute.xlu0 %463
  %465 = vrot.lane.b32.xlu0 %v167, 16
  %v466 = vpop.permute.xlu0 %465
  %467 = vrot.lane.b32.xlu0 %v168, 16
  %v468 = vpop.permute.xlu0 %467
  %469 = vrot.lane.b32.xlu0 %v169, 16
  %v470 = vpop.permute.xlu0 %469
  %471 = vrot.lane.b32.xlu0 %v170, 16
  %v472 = vpop.permute.xlu0 %471
  %473 = vrot.lane.b32.xlu0 %v171, 16
  %v474 = vpop.permute.xlu0 %473
  %475 = vrot.lane.b32.xlu0 %v172, 16
  %v476 = vpop.permute.xlu0 %475
  %477 = vrot.lane.b32.xlu0 %v173, 16
  %v478 = vpop.permute.xlu0 %477
  %511 = vrot.lane.b32.xlu0 %v174, 20
  %v512 = vpop.permute.xlu0 %511
  %513 = vrot.lane.b32.xlu0 %v175, 20
  %v514 = vpop.permute.xlu0 %513
  %515 = vrot.lane.b32.xlu0 %v176, 20
  %v516 = vpop.permute.xlu0 %515
  %517 = vrot.lane.b32.xlu0 %v177, 20
  %v518 = vpop.permute.xlu0 %517
  %519 = vrot.lane.b32.xlu0 %v178, 20
  %v520 = vpop.permute.xlu0 %519
  %521 = vrot.lane.b32.xlu0 %v179, 20
  %v522 = vpop.permute.xlu0 %521
  %523 = vrot.lane.b32.xlu0 %v180, 20
  %v524 = vpop.permute.xlu0 %523
  %525 = vrot.lane.b32.xlu0 %v181, 20
  %v526 = vpop.permute.xlu0 %525
  %527 = vrot.lane.b32.xlu0 %v182, 20
  %v528 = vpop.permute.xlu0 %527
  %529 = vrot.lane.b32.xlu0 %v183, 20
  %v530 = vpop.permute.xlu0 %529
  %531 = vrot.lane.b32.xlu0 %v184, 20
  %v532 = vpop.permute.xlu0 %531
  %533 = vrot.lane.b32.xlu0 %v185, 20
  %v534 = vpop.permute.xlu0 %533
  %535 = vrot.lane.b32.xlu0 %v186, 20
  %v536 = vpop.permute.xlu0 %535
  %537 = vrot.lane.b32.xlu0 %v187, 20
  %v538 = vpop.permute.xlu0 %537
  %539 = vrot.lane.b32.xlu0 %v188, 20
  %v540 = vpop.permute.xlu0 %539
  %541 = vrot.lane.b32.xlu0 %v189, 20
  %v542 = vpop.permute.xlu0 %541
  %575 = vrot.lane.b32.xlu0 %v191, 24
  %v576 = vpop.permute.xlu0 %575
  %577 = vrot.lane.b32.xlu0 %v192, 24
  %v578 = vpop.permute.xlu0 %577
  %579 = vrot.lane.b32.xlu0 %v193, 24
  %v580 = vpop.permute.xlu0 %579
  %581 = vrot.lane.b32.xlu0 %v194, 24
  %v582 = vpop.permute.xlu0 %581
  %583 = vrot.lane.b32.xlu0 %v195, 24
  %v584 = vpop.permute.xlu0 %583
  %585 = vrot.lane.b32.xlu0 %v196, 24
  %v586 = vpop.permute.xlu0 %585
  %587 = vrot.lane.b32.xlu0 %v197, 24
  %v588 = vpop.permute.xlu0 %587
  %589 = vrot.lane.b32.xlu0 %v198, 24
  %v590 = vpop.permute.xlu0 %589
  %591 = vrot.lane.b32.xlu0 %v199, 24
  %v592 = vpop.permute.xlu0 %591
  %593 = vrot.lane.b32.xlu0 %v200, 24
  %v594 = vpop.permute.xlu0 %593
  %595 = vrot.lane.b32.xlu0 %v201, 24
  %v596 = vpop.permute.xlu0 %595
  %597 = vrot.lane.b32.xlu0 %v202, 24
  %v598 = vpop.permute.xlu0 %597
  %599 = vrot.lane.b32.xlu0 %v203, 24
  %v600 = vpop.permute.xlu0 %599
  %601 = vrot.lane.b32.xlu0 %v204, 24
  %v602 = vpop.permute.xlu0 %601
  %603 = vrot.lane.b32.xlu0 %v205, 24
  %v604 = vpop.permute.xlu0 %603
  %605 = vrot.lane.b32.xlu0 %v206, 24
  %v606 = vpop.permute.xlu0 %605
  %639 = vrot.lane.b32.xlu0 %v207, 28
  %v640 = vpop.permute.xlu0 %639
  %641 = vrot.lane.b32.xlu0 %v208, 28
  %v642 = vpop.permute.xlu0 %641
  %643 = vrot.lane.b32.xlu0 %v209, 28
  %v644 = vpop.permute.xlu0 %643
  %645 = vrot.lane.b32.xlu0 %v210, 28
  %v646 = vpop.permute.xlu0 %645
  %647 = vrot.lane.b32.xlu0 %v211, 28
  %v648 = vpop.permute.xlu0 %647
  %649 = vrot.lane.b32.xlu0 %v212, 28
  %v650 = vpop.permute.xlu0 %649
  %651 = vrot.lane.b32.xlu0 %v213, 28
  %v652 = vpop.permute.xlu0 %651
  %653 = vrot.lane.b32.xlu0 %v214, 28
  %v654 = vpop.permute.xlu0 %653
  %655 = vrot.lane.b32.xlu0 %v215, 28
  %v656 = vpop.permute.xlu0 %655
  %657 = vrot.lane.b32.xlu0 %v216, 28
  %v658 = vpop.permute.xlu0 %657
  %659 = vrot.lane.b32.xlu0 %v217, 28
  %v660 = vpop.permute.xlu0 %659
  %661 = vrot.lane.b32.xlu0 %v218, 28
  %v662 = vpop.permute.xlu0 %661
  %663 = vrot.lane.b32.xlu0 %v219, 28
  %v664 = vpop.permute.xlu0 %663
  %665 = vrot.lane.b32.xlu0 %v220, 28
  %v666 = vpop.permute.xlu0 %665
  %667 = vrot.lane.b32.xlu0 %v221, 28
  %v668 = vpop.permute.xlu0 %667
  %669 = vrot.lane.b32.xlu0 %v222, 28
  %v670 = vpop.permute.xlu0 %669
  %703 = vrot.lane.b32.xlu0 %v223, 32
  %v704 = vpop.permute.xlu0 %703
  %705 = vrot.lane.b32.xlu0 %v224, 32
  %v706 = vpop.permute.xlu0 %705
  %707 = vrot.lane.b32.xlu0 %v225, 32
  %v708 = vpop.permute.xlu0 %707
  %709 = vrot.lane.b32.xlu0 %v226, 32
  %v710 = vpop.permute.xlu0 %709
  %711 = vrot.lane.b32.xlu0 %v227, 32
  %v712 = vpop.permute.xlu0 %711
  %713 = vrot.lane.b32.xlu0 %v228, 32
  %v714 = vpop.permute.xlu0 %713
  %715 = vrot.lane.b32.xlu0 %v229, 32
  %v716 = vpop.permute.xlu0 %715
  %717 = vrot.lane.b32.xlu0 %v230, 32
  %v718 = vpop.permute.xlu0 %717
  %719 = vrot.lane.b32.xlu0 %v231, 32
  %v720 = vpop.permute.xlu0 %719
  %721 = vrot.lane.b32.xlu0 %v232, 32
  %v722 = vpop.permute.xlu0 %721
  %723 = vrot.lane.b32.xlu0 %v233, 32
  %v724 = vpop.permute.xlu0 %723
  %725 = vrot.lane.b32.xlu0 %v234, 32
  %v726 = vpop.permute.xlu0 %725
  %727 = vrot.lane.b32.xlu0 %v235, 32
  %v728 = vpop.permute.xlu0 %727
  %729 = vrot.lane.b32.xlu0 %v236, 32
  %v730 = vpop.permute.xlu0 %729
  %731 = vrot.lane.b32.xlu0 %v237, 32
  %v732 = vpop.permute.xlu0 %731
  %733 = vrot.lane.b32.xlu0 %v238, 32
  %v734 = vpop.permute.xlu0 %733
  %v751 = vsel %vm35, %v94, %v256
  %v752 = vsel %vm35, %v95, %v258
  %v753 = vsel %vm35, %v96, %v260
  %v754 = vsel %vm35, %v97, %v262
  %v755 = vsel %vm35, %v98, %v264
  %v756 = vsel %vm35, %v99, %v266
  %v757 = vsel %vm35, %v100, %v268
  %v758 = vsel %vm35, %v101, %v270
  %v759 = vsel %vm35, %v102, %v272
  %v760 = vsel %vm35, %v103, %v274
  %v761 = vsel %vm35, %v104, %v276
  %v762 = vsel %vm35, %v105, %v278
  %v763 = vsel %vm35, %v106, %v280
  %v764 = vsel %vm35, %v107, %v282
  %v765 = vsel %vm35, %v108, %v284
  %v766 = vsel %vm35, %v109, %v286
  %vm767 = vcmask 64512
  %v768 = vsel %vm767, %v751, %v320
  %v769 = vsel %vm767, %v752, %v322
  %v770 = vsel %vm767, %v753, %v324
  %v771 = vsel %vm767, %v754, %v326
  %v772 = vsel %vm767, %v755, %v328
  %v773 = vsel %vm767, %v756, %v330
  %v774 = vsel %vm767, %v757, %v332
  %v775 = vsel %vm767, %v758, %v334
  %v776 = vsel %vm767, %v759, %v336
  %v777 = vsel %vm767, %v760, %v338
  %v778 = vsel %vm767, %v761, %v340
  %v779 = vsel %vm767, %v762, %v342
  %v780 = vsel %vm767, %v763, %v344
  %v781 = vsel %vm767, %v764, %v346
  %v782 = vsel %vm767, %v765, %v348
  %v783 = vsel %vm767, %v766, %v350
  %vm784 = vcmask 97280
  %v785 = vsel %vm784, %v768, %v384
  %v786 = vsel %vm784, %v769, %v386
  %v787 = vsel %vm784, %v770, %v388
  %v788 = vsel %vm784, %v771, %v390
  %v789 = vsel %vm784, %v772, %v392
  %v790 = vsel %vm784, %v773, %v394
  %v791 = vsel %vm784, %v774, %v396
  %v792 = vsel %vm784, %v775, %v398
  %v793 = vsel %vm784, %v776, %v400
  %v794 = vsel %vm784, %v777, %v402
  %v795 = vsel %vm784, %v778, %v404
  %v796 = vsel %vm784, %v779, %v406
  %v797 = vsel %vm784, %v780, %v408
  %v798 = vsel %vm784, %v781, %v410
  %v799 = vsel %vm784, %v782, %v412
  %v800 = vsel %vm784, %v783, %v414
  %vm801 = vcmask 130048
  %v802 = vsel %vm801, %v785, %v448
  %v803 = vsel %vm801, %v786, %v450
  %v804 = vsel %vm801, %v787, %v452
  %v805 = vsel %vm801, %v788, %v454
  %v806 = vsel %vm801, %v789, %v456
  %v807 = vsel %vm801, %v790, %v458
  %v808 = vsel %vm801, %v791, %v460
  %v809 = vsel %vm801, %v792, %v462
  %v810 = vsel %vm801, %v793, %v464
  %v811 = vsel %vm801, %v794, %v466
  %v812 = vsel %vm801, %v795, %v468
  %v813 = vsel %vm801, %v796, %v470
  %v814 = vsel %vm801, %v797, %v472
  %v815 = vsel %vm801, %v798, %v474
  %v816 = vsel %vm801, %v799, %v476
  %v817 = vsel %vm801, %v800, %v478
  %vm818 = vcmask 162816
  %v819 = vsel %vm818, %v802, %v512
  %v820 = vsel %vm818, %v803, %v514
  %v821 = vsel %vm818, %v804, %v516
  %v822 = vsel %vm818, %v805, %v518
  %v823 = vsel %vm818, %v806, %v520
  %v824 = vsel %vm818, %v807, %v522
  %v825 = vsel %vm818, %v808, %v524
  %v826 = vsel %vm818, %v809, %v526
  %v827 = vsel %vm818, %v810, %v528
  %v828 = vsel %vm818, %v811, %v530
  %v829 = vsel %vm818, %v812, %v532
  %v830 = vsel %vm818, %v813, %v534
  %v831 = vsel %vm818, %v814, %v536
  %v832 = vsel %vm818, %v815, %v538
  %v833 = vsel %vm818, %v816, %v540
  %v834 = vsel %vm818, %v817, %v542
  %vm835 = vcmask 195584
  %v836 = vsel %vm835, %v819, %v576
  %v837 = vsel %vm835, %v820, %v578
  %v838 = vsel %vm835, %v821, %v580
  %v839 = vsel %vm835, %v822, %v582
  %v840 = vsel %vm835, %v823, %v584
  %v841 = vsel %vm835, %v824, %v586
  %v842 = vsel %vm835, %v825, %v588
  %v843 = vsel %vm835, %v826, %v590
  %v844 = vsel %vm835, %v827, %v592
  %v845 = vsel %vm835, %v828, %v594
  %v846 = vsel %vm835, %v829, %v596
  %v847 = vsel %vm835, %v830, %v598
  %v848 = vsel %vm835, %v831, %v600
  %v849 = vsel %vm835, %v832, %v602
  %v850 = vsel %vm835, %v833, %v604
  %v851 = vsel %vm835, %v834, %v606
  %vm852 = vcmask 228352
  %v853 = vsel %vm852, %v836, %v640
  %v854 = vsel %vm852, %v837, %v642
  %v855 = vsel %vm852, %v838, %v644
  %v856 = vsel %vm852, %v839, %v646
  %v857 = vsel %vm852, %v840, %v648
  %v858 = vsel %vm852, %v841, %v650
  %v859 = vsel %vm852, %v842, %v652
  %v860 = vsel %vm852, %v843, %v654
  %v861 = vsel %vm852, %v844, %v656
  %v862 = vsel %vm852, %v845, %v658
  %v863 = vsel %vm852, %v846, %v660
  %v864 = vsel %vm852, %v847, %v662
  %v865 = vsel %vm852, %v848, %v664
  %v866 = vsel %vm852, %v849, %v666
  %v867 = vsel %vm852, %v850, %v668
  %v868 = vsel %vm852, %v851, %v670
  %vm869 = vcmask 261120
  %v870 = vsel %vm869, %v853, %v704
  %v871 = vsel %vm869, %v854, %v706
  %v872 = vsel %vm869, %v855, %v708
  %v873 = vsel %vm869, %v856, %v710
  %v874 = vsel %vm869, %v857, %v712
  %v875 = vsel %vm869, %v858, %v714
  %v876 = vsel %vm869, %v859, %v716
  %v877 = vsel %vm869, %v860, %v718
  %v878 = vsel %vm869, %v861, %v720
  %v879 = vsel %vm869, %v862, %v722
  %v880 = vsel %vm869, %v863, %v724
  %v881 = vsel %vm869, %v864, %v726
  %v882 = vsel %vm869, %v865, %v728
  %v883 = vsel %vm869, %v866, %v730
  %v884 = vsel %vm869, %v867, %v732
  %v885 = vsel %vm869, %v868, %v734
  %v886 = vld [vmem:[%s1] sm:$0xff]
  %v887 = vld [vmem:[%s1 + $0x8] sm:$0xff]
  %v888 = vld [vmem:[%s1 + $0x10] sm:$0xff]
  %v889 = vld [vmem:[%s1 + $0x18] sm:$0xff]
  %v890 = vld [vmem:[%s1 + $0x20] sm:$0xf]
  %vm891 = vcmask 293888
  %v893 = vsel %vm891, %v870, 0
  %v896 = vsel %vm891, %v871, 0
  %v899 = vsel %vm891, %v872, 0
  %v902 = vsel %vm891, %v873, 0
  %v905 = vsel %vm891, %v874, 0
  %v908 = vsel %vm891, %v875, 0
  %v911 = vsel %vm891, %v876, 0
  %v914 = vsel %vm891, %v877, 0
  %v917 = vsel %vm891, %v878, 0
  %v920 = vsel %vm891, %v879, 0
  %v923 = vsel %vm891, %v880, 0
  %v926 = vsel %vm891, %v881, 0
  %v929 = vsel %vm891, %v882, 0
  %v932 = vsel %vm891, %v883, 0
  %v935 = vsel %vm891, %v884, 0
  %v938 = vsel %vm891, %v885, 0
  %vm940 = vcmask 1043456
  %v942 = vsel %vm940, %v890, 0
  %944 = vmatprep.subr.mxu0 0.0
  %945 = vmatpush1.msra.mxu0 %v886
  %946 = vmatprep.subr.mxu0 0.0
  %947 = vmatpush1.msra.mxu0 %v887
  %948 = vmatprep.subr.mxu0 0.0
  %949 = vmatpush1.msra.mxu0 %v888
  %950 = vmatprep.subr.mxu0 0.0
  %951 = vmatpush1.msra.mxu0 %v889
  %952 = vmatprep.subr.mxu0 0.0
  %953 = vmatpush1.msra.mxu0 %v942
  %954 = vmatprep.subr.mxu0 0.0
  %955 = vmatpush1.msra.mxu0 0.0
  %956 = vmatprep.subr.mxu0 0.0
  %957 = vmatpush1.msra.mxu0 0.0
  %958 = vmatprep.subr.mxu0 0.0
  %959 = vmatpush1.msra.mxu0 0.0
  %960 = vmatprep.subr.mxu0 0.0
  %961 = vmatpush1.msra.mxu0 0.0
  %962 = vmatprep.subr.mxu0 0.0
  %963 = vmatpush1.msra.mxu0 0.0
  %964 = vmatprep.subr.mxu0 0.0
  %965 = vmatpush1.msra.mxu0 0.0
  %966 = vmatprep.subr.mxu0 0.0
  %967 = vmatpush1.msra.mxu0 0.0
  %968 = vmatprep.subr.mxu0 0.0
  %969 = vmatpush1.msra.mxu0 0.0
  %970 = vmatprep.subr.mxu0 0.0
  %971 = vmatpush1.msra.mxu0 0.0
  %972 = vmatprep.subr.mxu0 0.0
  %973 = vmatpush1.msra.mxu0 0.0
  %974 = vmatprep.subr.mxu0 0.0
  %975 = vmatpush1.msra.mxu0 0.0
  %976 = vmatprep.subr.mxu0 0.0
  %977 = vmatpush1.msra.mxu0 0.0
  %978 = vmatprep.subr.mxu0 0.0
  %979 = vmatpush1.msra.mxu0 0.0
  %980 = vmatprep.subr.mxu0 0.0
  %981 = vmatpush1.msra.mxu0 0.0
  %982 = vmatprep.subr.mxu0 0.0
  %983 = vmatpush1.msra.mxu0 0.0
  %984 = vmatprep.subr.mxu0 0.0
  %985 = vmatpush1.msra.mxu0 0.0
  %986 = vmatprep.subr.mxu0 0.0
  %987 = vmatpush1.msra.mxu0 0.0
  %988 = vmatprep.subr.mxu0 0.0
  %989 = vmatpush1.msra.mxu0 0.0
  %990 = vmatprep.subr.mxu0 0.0
  %991 = vmatpush1.msra.mxu0 0.0
  %992 = vmatprep.subr.mxu0 0.0
  %993 = vmatpush1.msra.mxu0 0.0
  %994 = vmatprep.subr.mxu0 0.0
  %995 = vmatpush1.msra.mxu0 0.0
  %996 = vmatprep.subr.mxu0 0.0
  %997 = vmatpush1.msra.mxu0 0.0
  %998 = vmatprep.subr.mxu0 0.0
  %999 = vmatpush1.msra.mxu0 0.0
  %1000 = vmatprep.subr.mxu0 0.0
  %1001 = vmatpush1.msra.mxu0 0.0
  %1002 = vmatprep.subr.mxu0 0.0
  %1003 = vmatpush1.msra.mxu0 0.0
  %1004 = vmatprep.subr.mxu0 0.0
  %1005 = vmatpush1.msra.mxu0 0.0
  %1006 = vmatprep.subr.mxu0 0.0
  %1007 = vmatpush1.msra.mxu0 0.0
  %1008 = vmatprep.mubr.f32.mxu0 0.0
  %1009 = vmatmul.mubr.f32.gmra.mrb[0].mxu0 %v893
  %v1010 = vpop.f32.mrb[0].mxu0
  %v1011 = vadd.f32 0.0, %v1010
  %v1012 = vpop.f32.mrb[0].mxu0
  %1013 = vmatprep.mubr.f32.mxu0 0.0
  %1014 = vmatmul.mubr.f32.gmra.mrb[0].mxu0 %v896
  %v1015 = vpop.f32.mrb[0].mxu0
  %v1016 = vadd.f32 0.0, %v1015
  %v1017 = vpop.f32.mrb[0].mxu0
  %1018 = vmatprep.mubr.f32.mxu0 0.0
  %1019 = vmatmul.mubr.f32.gmra.mrb[0].mxu0 %v899
  %v1020 = vpop.f32.mrb[0].mxu0
  %v1021 = vadd.f32 0.0, %v1020
  %v1022 = vpop.f32.mrb[0].mxu0
  %1023 = vmatprep.mubr.f32.mxu0 0.0
  %1024 = vmatmul.mubr.f32.gmra.mrb[0].mxu0 %v902
  %v1025 = vpop.f32.mrb[0].mxu0
  %v1026 = vadd.f32 0.0, %v1025
  %v1027 = vpop.f32.mrb[0].mxu0
  %1028 = vmatprep.mubr.f32.mxu0 0.0
  %1029 = vmatmul.mubr.f32.gmra.mrb[0].mxu0 %v905
  %v1030 = vpop.f32.mrb[0].mxu0
  %v1031 = vadd.f32 0.0, %v1030
  %v1032 = vpop.f32.mrb[0].mxu0
  %1033 = vmatprep.mubr.f32.mxu0 0.0
  %1034 = vmatmul.mubr.f32.gmra.mrb[0].mxu0 %v908
  %v1035 = vpop.f32.mrb[0].mxu0
  %v1036 = vadd.f32 0.0, %v1035
  %v1037 = vpop.f32.mrb[0].mxu0
  %1038 = vmatprep.mubr.f32.mxu0 0.0
  %1039 = vmatmul.mubr.f32.gmra.mrb[0].mxu0 %v911
  %v1040 = vpop.f32.mrb[0].mxu0
  %v1041 = vadd.f32 0.0, %v1040
  %v1042 = vpop.f32.mrb[0].mxu0
  %1043 = vmatprep.mubr.f32.mxu0 0.0
  %1044 = vmatmul.mubr.f32.gmra.mrb[0].mxu0 %v914
  %v1045 = vpop.f32.mrb[0].mxu0
  %v1046 = vadd.f32 0.0, %v1045
  %v1047 = vpop.f32.mrb[0].mxu0
  %1048 = vmatprep.mubr.f32.mxu0 0.0
  %1049 = vmatmul.mubr.f32.gmra.mrb[0].mxu0 %v917
  %v1050 = vpop.f32.mrb[0].mxu0
  %v1051 = vadd.f32 0.0, %v1050
  %v1052 = vpop.f32.mrb[0].mxu0
  %1053 = vmatprep.mubr.f32.mxu0 0.0
  %1054 = vmatmul.mubr.f32.gmra.mrb[0].mxu0 %v920
  %v1055 = vpop.f32.mrb[0].mxu0
  %v1056 = vadd.f32 0.0, %v1055
  %v1057 = vpop.f32.mrb[0].mxu0
  %1058 = vmatprep.mubr.f32.mxu0 0.0
  %1059 = vmatmul.mubr.f32.gmra.mrb[0].mxu0 %v923
  %v1060 = vpop.f32.mrb[0].mxu0
  %v1061 = vadd.f32 0.0, %v1060
  %v1062 = vpop.f32.mrb[0].mxu0
  %1063 = vmatprep.mubr.f32.mxu0 0.0
  %1064 = vmatmul.mubr.f32.gmra.mrb[0].mxu0 %v926
  %v1065 = vpop.f32.mrb[0].mxu0
  %v1066 = vadd.f32 0.0, %v1065
  %v1067 = vpop.f32.mrb[0].mxu0
  %1068 = vmatprep.mubr.f32.mxu0 0.0
  %1069 = vmatmul.mubr.f32.gmra.mrb[0].mxu0 %v929
  %v1070 = vpop.f32.mrb[0].mxu0
  %v1071 = vadd.f32 0.0, %v1070
  %v1072 = vpop.f32.mrb[0].mxu0
  %1073 = vmatprep.mubr.f32.mxu0 0.0
  %1074 = vmatmul.mubr.f32.gmra.mrb[0].mxu0 %v932
  %v1075 = vpop.f32.mrb[0].mxu0
  %v1076 = vadd.f32 0.0, %v1075
  %v1077 = vpop.f32.mrb[0].mxu0
  %1078 = vmatprep.mubr.f32.mxu0 0.0
  %1079 = vmatmul.mubr.f32.gmra.mrb[0].mxu0 %v935
  %v1080 = vpop.f32.mrb[0].mxu0
  %v1081 = vadd.f32 0.0, %v1080
  %v1082 = vpop.f32.mrb[0].mxu0
  %1083 = vmatprep.mubr.f32.mxu0 0.0
  %1084 = vmatmul.mubr.f32.gmra.mrb[0].mxu0 %v938
  %v1085 = vpop.f32.mrb[0].mxu0
  %v1086 = vadd.f32 0.0, %v1085
  %v1087 = vpop.f32.mrb[0].mxu0
  %1088 = vdwg.mxu0
  %v1089 = vlaneseq
  %v1090 = vshrl.u32 %v1089, 7
  %v1091 = vsub.s32 0, %v1090
  %v1092 = vrot.slane %v33, %v1091
  %v1093 = vmul.f32 %v1011, %v1092
  %v1094 = vmul.f32 %v1016, %v1092
  %v1095 = vmul.f32 %v1021, %v1092
  %v1096 = vmul.f32 %v1026, %v1092
  %v1097 = vmul.f32 %v1031, %v1092
  %v1098 = vmul.f32 %v1036, %v1092
  %v1099 = vmul.f32 %v1041, %v1092
  %v1100 = vmul.f32 %v1046, %v1092
  %v1101 = vmul.f32 %v1051, %v1092
  %v1102 = vmul.f32 %v1056, %v1092
  %v1103 = vmul.f32 %v1061, %v1092
  %v1104 = vmul.f32 %v1066, %v1092
  %v1105 = vmul.f32 %v1071, %v1092
  %v1106 = vmul.f32 %v1076, %v1092
  %v1107 = vmul.f32 %v1081, %v1092
  %v1108 = vmul.f32 %v1086, %v1092
  %v1109 = vlaneseq
  %v1110 = vshrl.u32 %v1109, 7
  %v1111 = vsub.s32 0, %v1110
  %v1112 = vrot.slane %v34, %v1111
  %v1113 = vadd.f32 %v1093, %v1112
  %v1114 = vadd.f32 %v1094, %v1112
  %v1115 = vadd.f32 %v1095, %v1112
  %v1116 = vadd.f32 %v1096, %v1112
  %v1117 = vadd.f32 %v1097, %v1112
  %v1118 = vadd.f32 %v1098, %v1112
  %v1119 = vadd.f32 %v1099, %v1112
  %v1120 = vadd.f32 %v1100, %v1112
  %v1121 = vadd.f32 %v1101, %v1112
  %v1122 = vadd.f32 %v1102, %v1112
  %v1123 = vadd.f32 %v1103, %v1112
  %v1124 = vadd.f32 %v1104, %v1112
  %v1125 = vadd.f32 %v1105, %v1112
  %v1126 = vadd.f32 %v1106, %v1112
  %v1127 = vadd.f32 %v1107, %v1112
  %v1128 = vadd.f32 %v1108, %v1112
  %v1129 = vmax.f32 %v1113, 0.0
  %v1130 = vmax.f32 %v1114, 0.0
  %v1131 = vmax.f32 %v1115, 0.0
  %v1132 = vmax.f32 %v1116, 0.0
  %v1133 = vmax.f32 %v1117, 0.0
  %v1134 = vmax.f32 %v1118, 0.0
  %v1135 = vmax.f32 %v1119, 0.0
  %v1136 = vmax.f32 %v1120, 0.0
  %v1137 = vmax.f32 %v1121, 0.0
  %v1138 = vmax.f32 %v1122, 0.0
  %v1139 = vmax.f32 %v1123, 0.0
  %v1140 = vmax.f32 %v1124, 0.0
  %v1141 = vmax.f32 %v1125, 0.0
  %v1142 = vmax.f32 %v1126, 0.0
  %v1143 = vmax.f32 %v1127, 0.0
  %v1144 = vmax.f32 %v1128, 0.0
  %v1145 = vld [vmem:[%s3 + $0x2] sm:$0x1]
  %v1146 = vld [vmem:[%s3 + $0x3] sm:$0x1]
  %1147 = vst.msk [vmem:[#allocation3] sm:$0xff] %vm767, 0.0
  %vm1148 = vcmask 58368
  %1149 = vst.msk [vmem:[#allocation3 + $0x8] sm:$0x3] %vm1148, 0.0
  %1150 = vst.msk [vmem:[#allocation3 + $0x10] sm:$0xff] %vm767, 0.0
  %1151 = vst.msk [vmem:[#allocation3 + $0x18] sm:$0x3] %vm1148, 0.0
  %1152 = vst.msk [vmem:[#allocation3 + $0x20] sm:$0xff] %vm767, 0.0
  %1153 = vst.msk [vmem:[#allocation3 + $0x28] sm:$0x3] %vm1148, 0.0
  %1154 = vst.msk [vmem:[#allocation3 + $0x30] sm:$0xff] %vm767, 0.0
  %1155 = vst.msk [vmem:[#allocation3 + $0x38] sm:$0x3] %vm1148, 0.0
  %1156 = vst.msk [vmem:[#allocation3 + $0x40] sm:$0xff] %vm767, 0.0
  %1157 = vst.msk [vmem:[#allocation3 + $0x48] sm:$0x3] %vm1148, 0.0
  %1158 = vst.msk [vmem:[#allocation3 + $0x50] sm:$0xff] %vm767, 0.0
  %1159 = vst.msk [vmem:[#allocation3 + $0x58] sm:$0x3] %vm1148, 0.0
  %1160 = vst.msk [vmem:[#allocation3 + $0x60] sm:$0xff] %vm767, 0.0
  %1161 = vst.msk [vmem:[#allocation3 + $0x68] sm:$0x3] %vm1148, 0.0
  %1162 = vst.msk [vmem:[#allocation3 + $0x70] sm:$0xff] %vm767, 0.0
  %1163 = vst.msk [vmem:[#allocation3 + $0x78] sm:$0x3] %vm1148, 0.0
  %1164 = vst.msk [vmem:[#allocation3 + $0x80] sm:$0xff] %vm767, 0.0
  %1165 = vst.msk [vmem:[#allocation3 + $0x88] sm:$0x3] %vm1148, 0.0
  %1166 = vst.msk [vmem:[#allocation3 + $0x90] sm:$0xff] %vm767, 0.0
  %1167 = vst.msk [vmem:[#allocation3 + $0x98] sm:$0x3] %vm1148, 0.0
  %1168 = vst.msk [vmem:[#allocation3 + $0xa0] sm:$0xff] %vm767, 0.0
  %1169 = vst.msk [vmem:[#allocation3 + $0xa8] sm:$0x3] %vm1148, 0.0
  %1170 = vst.msk [vmem:[#allocation3 + $0xb0] sm:$0xff] %vm767, 0.0
  %1171 = vst.msk [vmem:[#allocation3 + $0xb8] sm:$0x3] %vm1148, 0.0
  %1172 = vst.msk [vmem:[#allocation3 + $0xc0] sm:$0xff] %vm767, 0.0
  %1173 = vst.msk [vmem:[#allocation3 + $0xc8] sm:$0x3] %vm1148, 0.0
  %1174 = vst.msk [vmem:[#allocation3 + $0xd0] sm:$0xff] %vm767, 0.0
  %1175 = vst.msk [vmem:[#allocation3 + $0xd8] sm:$0x3] %vm1148, 0.0
  %1176 = vst.msk [vmem:[#allocation3 + $0xe0] sm:$0xff] %vm767, 0.0
  %1177 = vst.msk [vmem:[#allocation3 + $0xe8] sm:$0x3] %vm1148, 0.0
  %1178 = vst.msk [vmem:[#allocation3 + $0xf0] sm:$0xff] %vm767, 0.0
  %1179 = vst.msk [vmem:[#allocation3 + $0xf8] sm:$0x3] %vm1148, 0.0
  %1180 = vst.msk [vmem:[#allocation3 + $0x100] sm:$0xff] %vm767, 0.0
  %1181 = vst.msk [vmem:[#allocation3 + $0x108] sm:$0x3] %vm1148, 0.0
  %1182 = vst.msk [vmem:[#allocation3 + $0x110] sm:$0xff] %vm767, 0.0
  %1183 = vst.msk [vmem:[#allocation3 + $0x118] sm:$0x3] %vm1148, 0.0
  %1184 = vst.msk [vmem:[#allocation3 + $0x120] sm:$0xff] %vm767, 0.0
  %1185 = vst.msk [vmem:[#allocation3 + $0x128] sm:$0x3] %vm1148, 0.0
  %1186 = vst.msk [vmem:[#allocation3 + $0x130] sm:$0xff] %vm767, 0.0
  %1187 = vst.msk [vmem:[#allocation3 + $0x138] sm:$0x3] %vm1148, 0.0
  %s1188 = scalar_lea.vmem [#allocation3], 16
  %1189 = vst.msk [vmem:[%s1188 + $0x1] sm:$0xff] %vm767, %v1129
  %1190 = vst.msk [vmem:[%s1188 + $0x11] sm:$0xff] %vm767, %v1130
  %1191 = vst.msk [vmem:[%s1188 + $0x21] sm:$0xff] %vm767, %v1131
  %1192 = vst.msk [vmem:[%s1188 + $0x31] sm:$0xff] %vm767, %v1132
  %1193 = vst.msk [vmem:[%s1188 + $0x41] sm:$0xff] %vm767, %v1133
  %1194 = vst.msk [vmem:[%s1188 + $0x51] sm:$0xff] %vm767, %v1134
  %1195 = vst.msk [vmem:[%s1188 + $0x61] sm:$0xff] %vm767, %v1135
  %1196 = vst.msk [vmem:[%s1188 + $0x71] sm:$0xff] %vm767, %v1136
  %1197 = vst.msk [vmem:[%s1188 + $0xa1] sm:$0xff] %vm767, %v1137
  %1198 = vst.msk [vmem:[%s1188 + $0xb1] sm:$0xff] %vm767, %v1138
  %1199 = vst.msk [vmem:[%s1188 + $0xc1] sm:$0xff] %vm767, %v1139
  %1200 = vst.msk [vmem:[%s1188 + $0xd1] sm:$0xff] %vm767, %v1140
  %1201 = vst.msk [vmem:[%s1188 + $0xe1] sm:$0xff] %vm767, %v1141
  %1202 = vst.msk [vmem:[%s1188 + $0xf1] sm:$0xff] %vm767, %v1142
  %1203 = vst.msk [vmem:[%s1188 + $0x101] sm:$0xff] %vm767, %v1143
  %1204 = vst.msk [vmem:[%s1188 + $0x111] sm:$0xff] %vm767, %v1144
  %v1205 = vld [vmem:[#allocation3] sm:$0xff]
  %v1206 = vld [vmem:[#allocation3 + $0x10] sm:$0xff]
  %v1207 = vld [vmem:[#allocation3 + $0x20] sm:$0xff]
  %v1208 = vld [vmem:[#allocation3 + $0x30] sm:$0xff]
  %v1209 = vld [vmem:[#allocation3 + $0x40] sm:$0xff]
  %v1210 = vld [vmem:[#allocation3 + $0x50] sm:$0xff]
  %v1211 = vld [vmem:[#allocation3 + $0x60] sm:$0xff]
  %v1212 = vld [vmem:[#allocation3 + $0x70] sm:$0xff]
  %v1213 = vld [vmem:[#allocation3 + $0xa0] sm:$0xff]
  %v1214 = vld [vmem:[#allocation3 + $0xb0] sm:$0xff]
  %v1215 = vld [vmem:[#allocation3 + $0xc0] sm:$0xff]
  %v1216 = vld [vmem:[#allocation3 + $0xd0] sm:$0xff]
  %v1217 = vld [vmem:[#allocation3 + $0xe0] sm:$0xff]
  %v1218 = vld [vmem:[#allocation3 + $0xf0] sm:$0xff]
  %v1219 = vld [vmem:[#allocation3 + $0x100] sm:$0xff]
  %v1220 = vld [vmem:[#allocation3 + $0x110] sm:$0xff]
  %v1221 = vld [vmem:[#allocation3 + $0x1] sm:$0xff]
  %v1222 = vld [vmem:[#allocation3 + $0x11] sm:$0xff]
  %v1223 = vld [vmem:[#allocation3 + $0x21] sm:$0xff]
  %v1224 = vld [vmem:[#allocation3 + $0x31] sm:$0xff]
  %v1225 = vld [vmem:[#allocation3 + $0x41] sm:$0xff]
  %v1226 = vld [vmem:[#allocation3 + $0x51] sm:$0xff]
  %v1227 = vld [vmem:[#allocation3 + $0x61] sm:$0xff]
  %v1228 = vld [vmem:[#allocation3 + $0x71] sm:$0xff]
  %v1229 = vld [vmem:[#allocation3 + $0xa1] sm:$0xff]
  %v1230 = vld [vmem:[#allocation3 + $0xb1] sm:$0xff]
  %v1231 = vld [vmem:[#allocation3 + $0xc1] sm:$0xff]
  %v1232 = vld [vmem:[#allocation3 + $0xd1] sm:$0xff]
  %v1233 = vld [vmem:[#allocation3 + $0xe1] sm:$0xff]
  %v1234 = vld [vmem:[#allocation3 + $0xf1] sm:$0xff]
  %v1235 = vld [vmem:[#allocation3 + $0x101] sm:$0xff]
  %v1236 = vld [vmem:[#allocation3 + $0x111] sm:$0xff]
  %v1237 = vld [vmem:[#allocation3 + $0x2] sm:$0xff]
  %v1238 = vld [vmem:[#allocation3 + $0x12] sm:$0xff]
  %v1239 = vld [vmem:[#allocation3 + $0x22] sm:$0xff]
  %v1240 = vld [vmem:[#allocation3 + $0x32] sm:$0xff]
  %v1241 = vld [vmem:[#allocation3 + $0x42] sm:$0xff]
  %v1242 = vld [vmem:[#allocation3 + $0x52] sm:$0xff]
  %v1243 = vld [vmem:[#allocation3 + $0x62] sm:$0xff]
  %v1244 = vld [vmem:[#allocation3 + $0x72] sm:$0xff]
  %v1245 = vld [vmem:[#allocation3 + $0xa2] sm:$0xff]
  %v1246 = vld [vmem:[#allocation3 + $0xb2] sm:$0xff]
  %v1247 = vld [vmem:[#allocation3 + $0xc2] sm:$0xff]
  %v1248 = vld [vmem:[#allocation3 + $0xd2] sm:$0xff]
  %v1249 = vld [vmem:[#allocation3 + $0xe2] sm:$0xff]
  %v1250 = vld [vmem:[#allocation3 + $0xf2] sm:$0xff]
  %v1251 = vld [vmem:[#allocation3 + $0x102] sm:$0xff]
  %v1252 = vld [vmem:[#allocation3 + $0x112] sm:$0xff]
  %v1253 = vld [vmem:[%s1188] sm:$0xff]
  %v1254 = vld [vmem:[%s1188 + $0x10] sm:$0xff]
  %v1255 = vld [vmem:[%s1188 + $0x20] sm:$0xff]
  %v1256 = vld [vmem:[%s1188 + $0x30] sm:$0xff]
  %v1257 = vld [vmem:[%s1188 + $0x40] sm:$0xff]
  %v1258 = vld [vmem:[%s1188 + $0x50] sm:$0xff]
  %v1259 = vld [vmem:[%s1188 + $0x60] sm:$0xff]
  %v1260 = vld [vmem:[%s1188 + $0x70] sm:$0xff]
  %v1261 = vld [vmem:[%s1188 + $0xa0] sm:$0xff]
  %v1262 = vld [vmem:[%s1188 + $0xb0] sm:$0xff]
  %v1263 = vld [vmem:[%s1188 + $0xc0] sm:$0xff]
  %v1264 = vld [vmem:[%s1188 + $0xd0] sm:$0xff]
  %v1265 = vld [vmem:[%s1188 + $0xe0] sm:$0xff]
  %v1266 = vld [vmem:[%s1188 + $0xf0] sm:$0xff]
  %v1267 = vld [vmem:[%s1188 + $0x100] sm:$0xff]
  %v1268 = vld [vmem:[%s1188 + $0x110] sm:$0xff]
  %v1269 = vld [vmem:[%s1188 + $0x1] sm:$0xff]
  %v1270 = vld [vmem:[%s1188 + $0x11] sm:$0xff]
  %v1271 = vld [vmem:[%s1188 + $0x21] sm:$0xff]
  %v1272 = vld [vmem:[%s1188 + $0x31] sm:$0xff]
  %v1273 = vld [vmem:[%s1188 + $0x41] sm:$0xff]
  %v1274 = vld [vmem:[%s1188 + $0x51] sm:$0xff]
  %v1275 = vld [vmem:[%s1188 + $0x61] sm:$0xff]
  %v1276 = vld [vmem:[%s1188 + $0x71] sm:$0xff]
  %v1277 = vld [vmem:[%s1188 + $0xa1] sm:$0xff]
  %v1278 = vld [vmem:[%s1188 + $0xb1] sm:$0xff]
  %v1279 = vld [vmem:[%s1188 + $0xc1] sm:$0xff]
  %v1280 = vld [vmem:[%s1188 + $0xd1] sm:$0xff]
  %v1281 = vld [vmem:[%s1188 + $0xe1] sm:$0xff]
  %v1282 = vld [vmem:[%s1188 + $0xf1] sm:$0xff]
  %v1283 = vld [vmem:[%s1188 + $0x101] sm:$0xff]
  %v1284 = vld [vmem:[%s1188 + $0x111] sm:$0xff]
  %v1285 = vld [vmem:[%s1188 + $0x2] sm:$0xff]
  %v1286 = vld [vmem:[%s1188 + $0x12] sm:$0xff]
  %v1287 = vld [vmem:[%s1188 + $0x22] sm:$0xff]
  %v1288 = vld [vmem:[%s1188 + $0x32] sm:$0xff]
  %v1289 = vld [vmem:[%s1188 + $0x42] sm:$0xff]
  %v1290 = vld [vmem:[%s1188 + $0x52] sm:$0xff]
  %v1291 = vld [vmem:[%s1188 + $0x62] sm:$0xff]
  %v1292 = vld [vmem:[%s1188 + $0x72] sm:$0xff]
  %v1293 = vld [vmem:[%s1188 + $0xa2] sm:$0xff]
  %v1294 = vld [vmem:[%s1188 + $0xb2] sm:$0xff]
  %v1295 = vld [vmem:[%s1188 + $0xc2] sm:$0xff]
  %v1296 = vld [vmem:[%s1188 + $0xd2] sm:$0xff]
  %v1297 = vld [vmem:[%s1188 + $0xe2] sm:$0xff]
  %v1298 = vld [vmem:[%s1188 + $0xf2] sm:$0xff]
  %v1299 = vld [vmem:[%s1188 + $0x102] sm:$0xff]
  %v1300 = vld [vmem:[%s1188 + $0x112] sm:$0xff]
  %s1301 = scalar_lea.vmem [#allocation3], 32
  %v1302 = vld [vmem:[%s1301] sm:$0xff]
  %v1303 = vld [vmem:[%s1301 + $0x10] sm:$0xff]
  %v1304 = vld [vmem:[%s1301 + $0x20] sm:$0xff]
  %v1305 = vld [vmem:[%s1301 + $0x30] sm:$0xff]
  %v1306 = vld [vmem:[%s1301 + $0x40] sm:$0xff]
  %v1307 = vld [vmem:[%s1301 + $0x50] sm:$0xff]
  %v1308 = vld [vmem:[%s1301 + $0x60] sm:$0xff]
  %v1309 = vld [vmem:[%s1301 + $0x70] sm:$0xff]
  %v1310 = vld [vmem:[%s1301 + $0xa0] sm:$0xff]
  %v1311 = vld [vmem:[%s1301 + $0xb0] sm:$0xff]
  %v1312 = vld [vmem:[%s1301 + $0xc0] sm:$0xff]
  %v1313 = vld [vmem:[%s1301 + $0xd0] sm:$0xff]
  %v1314 = vld [vmem:[%s1301 + $0xe0] sm:$0xff]
  %v1315 = vld [vmem:[%s1301 + $0xf0] sm:$0xff]
  %v1316 = vld [vmem:[%s1301 + $0x100] sm:$0xff]
  %v1317 = vld [vmem:[%s1301 + $0x110] sm:$0xff]
  %v1318 = vld [vmem:[%s1301 + $0x1] sm:$0xff]
  %v1319 = vld [vmem:[%s1301 + $0x11] sm:$0xff]
  %v1320 = vld [vmem:[%s1301 + $0x21] sm:$0xff]
  %v1321 = vld [vmem:[%s1301 + $0x31] sm:$0xff]
  %v1322 = vld [vmem:[%s1301 + $0x41] sm:$0xff]
  %v1323 = vld [vmem:[%s1301 + $0x51] sm:$0xff]
  %v1324 = vld [vmem:[%s1301 + $0x61] sm:$0xff]
  %v1325 = vld [vmem:[%s1301 + $0x71] sm:$0xff]
  %v1326 = vld [vmem:[%s1301 + $0xa1] sm:$0xff]
  %v1327 = vld [vmem:[%s1301 + $0xb1] sm:$0xff]
  %v1328 = vld [vmem:[%s1301 + $0xc1] sm:$0xff]
  %v1329 = vld [vmem:[%s1301 + $0xd1] sm:$0xff]
  %v1330 = vld [vmem:[%s1301 + $0xe1] sm:$0xff]
  %v1331 = vld [vmem:[%s1301 + $0xf1] sm:$0xff]
  %v1332 = vld [vmem:[%s1301 + $0x101] sm:$0xff]
  %v1333 = vld [vmem:[%s1301 + $0x111] sm:$0xff]
  %v1334 = vld [vmem:[%s1301 + $0x2] sm:$0xff]
  %v1335 = vld [vmem:[%s1301 + $0x12] sm:$0xff]
  %v1336 = vld [vmem:[%s1301 + $0x22] sm:$0xff]
  %v1337 = vld [vmem:[%s1301 + $0x32] sm:$0xff]
  %v1338 = vld [vmem:[%s1301 + $0x42] sm:$0xff]
  %v1339 = vld [vmem:[%s1301 + $0x52] sm:$0xff]
  %v1340 = vld [vmem:[%s1301 + $0x62] sm:$0xff]
  %v1341 = vld [vmem:[%s1301 + $0x72] sm:$0xff]
  %v1342 = vld [vmem:[%s1301 + $0xa2] sm:$0xff]
  %v1343 = vld [vmem:[%s1301 + $0xb2] sm:$0xff]
  %v1344 = vld [vmem:[%s1301 + $0xc2] sm:$0xff]
  %v1345 = vld [vmem:[%s1301 + $0xd2] sm:$0xff]
  %v1346 = vld [vmem:[%s1301 + $0xe2] sm:$0xff]
  %v1347 = vld [vmem:[%s1301 + $0xf2] sm:$0xff]
  %v1348 = vld [vmem:[%s1301 + $0x102] sm:$0xff]
  %v1349 = vld [vmem:[%s1301 + $0x112] sm:$0xff]
  %1366 = vrot.lane.b32.xlu0 %v1221, 8
  %v1367 = vpop.permute.xlu0 %1366
  %1368 = vrot.lane.b32.xlu0 %v1222, 8
  %v1369 = vpop.permute.xlu0 %1368
  %1370 = vrot.lane.b32.xlu0 %v1223, 8
  %v1371 = vpop.permute.xlu0 %1370
  %1372 = vrot.lane.b32.xlu0 %v1224, 8
  %v1373 = vpop.permute.xlu0 %1372
  %1374 = vrot.lane.b32.xlu0 %v1225, 8
  %v1375 = vpop.permute.xlu0 %1374
  %1376 = vrot.lane.b32.xlu0 %v1226, 8
  %v1377 = vpop.permute.xlu0 %1376
  %1378 = vrot.lane.b32.xlu0 %v1227, 8
  %v1379 = vpop.permute.xlu0 %1378
  %1380 = vrot.lane.b32.xlu0 %v1228, 8
  %v1381 = vpop.permute.xlu0 %1380
  %1382 = vrot.lane.b32.xlu0 %v1229, 8
  %v1383 = vpop.permute.xlu0 %1382
  %1384 = vrot.lane.b32.xlu0 %v1230, 8
  %v1385 = vpop.permute.xlu0 %1384
  %1386 = vrot.lane.b32.xlu0 %v1231, 8
  %v1387 = vpop.permute.xlu0 %1386
  %1388 = vrot.lane.b32.xlu0 %v1232, 8
  %v1389 = vpop.permute.xlu0 %1388
  %1390 = vrot.lane.b32.xlu0 %v1233, 8
  %v1391 = vpop.permute.xlu0 %1390
  %1392 = vrot.lane.b32.xlu0 %v1234, 8
  %v1393 = vpop.permute.xlu0 %1392
  %1394 = vrot.lane.b32.xlu0 %v1235, 8
  %v1395 = vpop.permute.xlu0 %1394
  %1396 = vrot.lane.b32.xlu0 %v1236, 8
  %v1397 = vpop.permute.xlu0 %1396
  %1430 = vrot.lane.b32.xlu0 %v1237, 16
  %v1431 = vpop.permute.xlu0 %1430
  %1432 = vrot.lane.b32.xlu0 %v1238, 16
  %v1433 = vpop.permute.xlu0 %1432
  %1434 = vrot.lane.b32.xlu0 %v1239, 16
  %v1435 = vpop.permute.xlu0 %1434
  %1436 = vrot.lane.b32.xlu0 %v1240, 16
  %v1437 = vpop.permute.xlu0 %1436
  %1438 = vrot.lane.b32.xlu0 %v1241, 16
  %v1439 = vpop.permute.xlu0 %1438
  %1440 = vrot.lane.b32.xlu0 %v1242, 16
  %v1441 = vpop.permute.xlu0 %1440
  %1442 = vrot.lane.b32.xlu0 %v1243, 16
  %v1443 = vpop.permute.xlu0 %1442
  %1444 = vrot.lane.b32.xlu0 %v1244, 16
  %v1445 = vpop.permute.xlu0 %1444
  %1446 = vrot.lane.b32.xlu0 %v1245, 16
  %v1447 = vpop.permute.xlu0 %1446
  %1448 = vrot.lane.b32.xlu0 %v1246, 16
  %v1449 = vpop.permute.xlu0 %1448
  %1450 = vrot.lane.b32.xlu0 %v1247, 16
  %v1451 = vpop.permute.xlu0 %1450
  %1452 = vrot.lane.b32.xlu0 %v1248, 16
  %v1453 = vpop.permute.xlu0 %1452
  %1454 = vrot.lane.b32.xlu0 %v1249, 16
  %v1455 = vpop.permute.xlu0 %1454
  %1456 = vrot.lane.b32.xlu0 %v1250, 16
  %v1457 = vpop.permute.xlu0 %1456
  %1458 = vrot.lane.b32.xlu0 %v1251, 16
  %v1459 = vpop.permute.xlu0 %1458
  %1460 = vrot.lane.b32.xlu0 %v1252, 16
  %v1461 = vpop.permute.xlu0 %1460
  %1494 = vrot.lane.b32.xlu0 %v1253, 24
  %v1495 = vpop.permute.xlu0 %1494
  %1496 = vrot.lane.b32.xlu0 %v1254, 24
  %v1497 = vpop.permute.xlu0 %1496
  %1498 = vrot.lane.b32.xlu0 %v1255, 24
  %v1499 = vpop.permute.xlu0 %1498
  %1500 = vrot.lane.b32.xlu0 %v1256, 24
  %v1501 = vpop.permute.xlu0 %1500
  %1502 = vrot.lane.b32.xlu0 %v1257, 24
  %v1503 = vpop.permute.xlu0 %1502
  %1504 = vrot.lane.b32.xlu0 %v1258, 24
  %v1505 = vpop.permute.xlu0 %1504
  %1506 = vrot.lane.b32.xlu0 %v1259, 24
  %v1507 = vpop.permute.xlu0 %1506
  %1508 = vrot.lane.b32.xlu0 %v1260, 24
  %v1509 = vpop.permute.xlu0 %1508
  %1510 = vrot.lane.b32.xlu0 %v1261, 24
  %v1511 = vpop.permute.xlu0 %1510
  %1512 = vrot.lane.b32.xlu0 %v1262, 24
  %v1513 = vpop.permute.xlu0 %1512
  %1514 = vrot.lane.b32.xlu0 %v1263, 24
  %v1515 = vpop.permute.xlu0 %1514
  %1516 = vrot.lane.b32.xlu0 %v1264, 24
  %v1517 = vpop.permute.xlu0 %1516
  %1518 = vrot.lane.b32.xlu0 %v1265, 24
  %v1519 = vpop.permute.xlu0 %1518
  %1520 = vrot.lane.b32.xlu0 %v1266, 24
  %v1521 = vpop.permute.xlu0 %1520
  %1522 = vrot.lane.b32.xlu0 %v1267, 24
  %v1523 = vpop.permute.xlu0 %1522
  %1524 = vrot.lane.b32.xlu0 %v1268, 24
  %v1525 = vpop.permute.xlu0 %1524
  %1558 = vrot.lane.b32.xlu0 %v1269, 32
  %v1559 = vpop.permute.xlu0 %1558
  %1560 = vrot.lane.b32.xlu0 %v1270, 32
  %v1561 = vpop.permute.xlu0 %1560
  %1562 = vrot.lane.b32.xlu0 %v1271, 32
  %v1563 = vpop.permute.xlu0 %1562
  %1564 = vrot.lane.b32.xlu0 %v1272, 32
  %v1565 = vpop.permute.xlu0 %1564
  %1566 = vrot.lane.b32.xlu0 %v1273, 32
  %v1567 = vpop.permute.xlu0 %1566
  %1568 = vrot.lane.b32.xlu0 %v1274, 32
  %v1569 = vpop.permute.xlu0 %1568
  %1570 = vrot.lane.b32.xlu0 %v1275, 32
  %v1571 = vpop.permute.xlu0 %1570
  %1572 = vrot.lane.b32.xlu0 %v1276, 32
  %v1573 = vpop.permute.xlu0 %1572
  %1574 = vrot.lane.b32.xlu0 %v1277, 32
  %v1575 = vpop.permute.xlu0 %1574
  %1576 = vrot.lane.b32.xlu0 %v1278, 32
  %v1577 = vpop.permute.xlu0 %1576
  %1578 = vrot.lane.b32.xlu0 %v1279, 32
  %v1579 = vpop.permute.xlu0 %1578
  %1580 = vrot.lane.b32.xlu0 %v1280, 32
  %v1581 = vpop.permute.xlu0 %1580
  %1582 = vrot.lane.b32.xlu0 %v1281, 32
  %v1583 = vpop.permute.xlu0 %1582
  %1584 = vrot.lane.b32.xlu0 %v1282, 32
  %v1585 = vpop.permute.xlu0 %1584
  %1586 = vrot.lane.b32.xlu0 %v1283, 32
  %v1587 = vpop.permute.xlu0 %1586
  %1588 = vrot.lane.b32.xlu0 %v1284, 32
  %v1589 = vpop.permute.xlu0 %1588
  %1622 = vrot.lane.b32.xlu0 %v1285, 40
  %v1623 = vpop.permute.xlu0 %1622
  %1624 = vrot.lane.b32.xlu0 %v1286, 40
  %v1625 = vpop.permute.xlu0 %1624
  %1626 = vrot.lane.b32.xlu0 %v1287, 40
  %v1627 = vpop.permute.xlu0 %1626
  %1628 = vrot.lane.b32.xlu0 %v1288, 40
  %v1629 = vpop.permute.xlu0 %1628
  %1630 = vrot.lane.b32.xlu0 %v1289, 40
  %v1631 = vpop.permute.xlu0 %1630
  %1632 = vrot.lane.b32.xlu0 %v1290, 40
  %v1633 = vpop.permute.xlu0 %1632
  %1634 = vrot.lane.b32.xlu0 %v1291, 40
  %v1635 = vpop.permute.xlu0 %1634
  %1636 = vrot.lane.b32.xlu0 %v1292, 40
  %v1637 = vpop.permute.xlu0 %1636
  %1638 = vrot.lane.b32.xlu0 %v1293, 40
  %v1639 = vpop.permute.xlu0 %1638
  %1640 = vrot.lane.b32.xlu0 %v1294, 40
  %v1641 = vpop.permute.xlu0 %1640
  %1642 = vrot.lane.b32.xlu0 %v1295, 40
  %v1643 = vpop.permute.xlu0 %1642
  %1644 = vrot.lane.b32.xlu0 %v1296, 40
  %v1645 = vpop.permute.xlu0 %1644
  %1646 = vrot.lane.b32.xlu0 %v1297, 40
  %v1647 = vpop.permute.xlu0 %1646
  %1648 = vrot.lane.b32.xlu0 %v1298, 40
  %v1649 = vpop.permute.xlu0 %1648
  %1650 = vrot.lane.b32.xlu0 %v1299, 40
  %v1651 = vpop.permute.xlu0 %1650
  %1652 = vrot.lane.b32.xlu0 %v1300, 40
  %v1653 = vpop.permute.xlu0 %1652
  %1686 = vrot.lane.b32.xlu0 %v1302, 48
  %v1687 = vpop.permute.xlu0 %1686
  %1688 = vrot.lane.b32.xlu0 %v1303, 48
  %v1689 = vpop.permute.xlu0 %1688
  %1690 = vrot.lane.b32.xlu0 %v1304, 48
  %v1691 = vpop.permute.xlu0 %1690
  %1692 = vrot.lane.b32.xlu0 %v1305, 48
  %v1693 = vpop.permute.xlu0 %1692
  %1694 = vrot.lane.b32.xlu0 %v1306, 48
  %v1695 = vpop.permute.xlu0 %1694
  %1696 = vrot.lane.b32.xlu0 %v1307, 48
  %v1697 = vpop.permute.xlu0 %1696
  %1698 = vrot.lane.b32.xlu0 %v1308, 48
  %v1699 = vpop.permute.xlu0 %1698
  %1700 = vrot.lane.b32.xlu0 %v1309, 48
  %v1701 = vpop.permute.xlu0 %1700
  %1702 = vrot.lane.b32.xlu0 %v1310, 48
  %v1703 = vpop.permute.xlu0 %1702
  %1704 = vrot.lane.b32.xlu0 %v1311, 48
  %v1705 = vpop.permute.xlu0 %1704
  %1706 = vrot.lane.b32.xlu0 %v1312, 48
  %v1707 = vpop.permute.xlu0 %1706
  %1708 = vrot.lane.b32.xlu0 %v1313, 48
  %v1709 = vpop.permute.xlu0 %1708
  %1710 = vrot.lane.b32.xlu0 %v1314, 48
  %v1711 = vpop.permute.xlu0 %1710
  %1712 = vrot.lane.b32.xlu0 %v1315, 48
  %v1713 = vpop.permute.xlu0 %1712
  %1714 = vrot.lane.b32.xlu0 %v1316, 48
  %v1715 = vpop.permute.xlu0 %1714
  %1716 = vrot.lane.b32.xlu0 %v1317, 48
  %v1717 = vpop.permute.xlu0 %1716
  %1750 = vrot.lane.b32.xlu0 %v1318, 56
  %v1751 = vpop.permute.xlu0 %1750
  %1752 = vrot.lane.b32.xlu0 %v1319, 56
  %v1753 = vpop.permute.xlu0 %1752
  %1754 = vrot.lane.b32.xlu0 %v1320, 56
  %v1755 = vpop.permute.xlu0 %1754
  %1756 = vrot.lane.b32.xlu0 %v1321, 56
  %v1757 = vpop.permute.xlu0 %1756
  %1758 = vrot.lane.b32.xlu0 %v1322, 56
  %v1759 = vpop.permute.xlu0 %1758
  %1760 = vrot.lane.b32.xlu0 %v1323, 56
  %v1761 = vpop.permute.xlu0 %1760
  %1762 = vrot.lane.b32.xlu0 %v1324, 56
  %v1763 = vpop.permute.xlu0 %1762
  %1764 = vrot.lane.b32.xlu0 %v1325, 56
  %v1765 = vpop.permute.xlu0 %1764
  %1766 = vrot.lane.b32.xlu0 %v1326, 56
  %v1767 = vpop.permute.xlu0 %1766
  %1768 = vrot.lane.b32.xlu0 %v1327, 56
  %v1769 = vpop.permute.xlu0 %1768
  %1770 = vrot.lane.b32.xlu0 %v1328, 56
  %v1771 = vpop.permute.xlu0 %1770
  %1772 = vrot.lane.b32.xlu0 %v1329, 56
  %v1773 = vpop.permute.xlu0 %1772
  %1774 = vrot.lane.b32.xlu0 %v1330, 56
  %v1775 = vpop.permute.xlu0 %1774
  %1776 = vrot.lane.b32.xlu0 %v1331, 56
  %v1777 = vpop.permute.xlu0 %1776
  %1778 = vrot.lane.b32.xlu0 %v1332, 56
  %v1779 = vpop.permute.xlu0 %1778
  %1780 = vrot.lane.b32.xlu0 %v1333, 56
  %v1781 = vpop.permute.xlu0 %1780
  %1814 = vrot.lane.b32.xlu0 %v1334, 64
  %v1815 = vpop.permute.xlu0 %1814
  %1816 = vrot.lane.b32.xlu0 %v1335, 64
  %v1817 = vpop.permute.xlu0 %1816
  %1818 = vrot.lane.b32.xlu0 %v1336, 64
  %v1819 = vpop.permute.xlu0 %1818
  %1820 = vrot.lane.b32.xlu0 %v1337, 64
  %v1821 = vpop.permute.xlu0 %1820
  %1822 = vrot.lane.b32.xlu0 %v1338, 64
  %v1823 = vpop.permute.xlu0 %1822
  %1824 = vrot.lane.b32.xlu0 %v1339, 64
  %v1825 = vpop.permute.xlu0 %1824
  %1826 = vrot.lane.b32.xlu0 %v1340, 64
  %v1827 = vpop.permute.xlu0 %1826
  %1828 = vrot.lane.b32.xlu0 %v1341, 64
  %v1829 = vpop.permute.xlu0 %1828
  %1830 = vrot.lane.b32.xlu0 %v1342, 64
  %v1831 = vpop.permute.xlu0 %1830
  %1832 = vrot.lane.b32.xlu0 %v1343, 64
  %v1833 = vpop.permute.xlu0 %1832
  %1834 = vrot.lane.b32.xlu0 %v1344, 64
  %v1835 = vpop.permute.xlu0 %1834
  %1836 = vrot.lane.b32.xlu0 %v1345, 64
  %v1837 = vpop.permute.xlu0 %1836
  %1838 = vrot.lane.b32.xlu0 %v1346, 64
  %v1839 = vpop.permute.xlu0 %1838
  %1840 = vrot.lane.b32.xlu0 %v1347, 64
  %v1841 = vpop.permute.xlu0 %1840
  %1842 = vrot.lane.b32.xlu0 %v1348, 64
  %v1843 = vpop.permute.xlu0 %1842
  %1844 = vrot.lane.b32.xlu0 %v1349, 64
  %v1845 = vpop.permute.xlu0 %1844
  %v1862 = vsel %vm767, %v1205, %v1367
  %v1863 = vsel %vm767, %v1206, %v1369
  %v1864 = vsel %vm767, %v1207, %v1371
  %v1865 = vsel %vm767, %v1208, %v1373
  %v1866 = vsel %vm767, %v1209, %v1375
  %v1867 = vsel %vm767, %v1210, %v1377
  %v1868 = vsel %vm767, %v1211, %v1379
  %v1869 = vsel %vm767, %v1212, %v1381
  %v1870 = vsel %vm767, %v1213, %v1383
  %v1871 = vsel %vm767, %v1214, %v1385
  %v1872 = vsel %vm767, %v1215, %v1387
  %v1873 = vsel %vm767, %v1216, %v1389
  %v1874 = vsel %vm767, %v1217, %v1391
  %v1875 = vsel %vm767, %v1218, %v1393
  %v1876 = vsel %vm767, %v1219, %v1395
  %v1877 = vsel %vm767, %v1220, %v1397
  %v1878 = vsel %vm801, %v1862, %v1431
  %v1879 = vsel %vm801, %v1863, %v1433
  %v1880 = vsel %vm801, %v1864, %v1435
  %v1881 = vsel %vm801, %v1865, %v1437
  %v1882 = vsel %vm801, %v1866, %v1439
  %v1883 = vsel %vm801, %v1867, %v1441
  %v1884 = vsel %vm801, %v1868, %v1443
  %v1885 = vsel %vm801, %v1869, %v1445
  %v1886 = vsel %vm801, %v1870, %v1447
  %v1887 = vsel %vm801, %v1871, %v1449
  %v1888 = vsel %vm801, %v1872, %v1451
  %v1889 = vsel %vm801, %v1873, %v1453
  %v1890 = vsel %vm801, %v1874, %v1455
  %v1891 = vsel %vm801, %v1875, %v1457
  %v1892 = vsel %vm801, %v1876, %v1459
  %v1893 = vsel %vm801, %v1877, %v1461
  %v1894 = vsel %vm835, %v1878, %v1495
  %v1895 = vsel %vm835, %v1879, %v1497
  %v1896 = vsel %vm835, %v1880, %v1499
  %v1897 = vsel %vm835, %v1881, %v1501
  %v1898 = vsel %vm835, %v1882, %v1503
  %v1899 = vsel %vm835, %v1883, %v1505
  %v1900 = vsel %vm835, %v1884, %v1507
  %v1901 = vsel %vm835, %v1885, %v1509
  %v1902 = vsel %vm835, %v1886, %v1511
  %v1903 = vsel %vm835, %v1887, %v1513
  %v1904 = vsel %vm835, %v1888, %v1515
  %v1905 = vsel %vm835, %v1889, %v1517
  %v1906 = vsel %vm835, %v1890, %v1519
  %v1907 = vsel %vm835, %v1891, %v1521
  %v1908 = vsel %vm835, %v1892, %v1523
  %v1909 = vsel %vm835, %v1893, %v1525
  %v1910 = vsel %vm869, %v1894, %v1559
  %v1911 = vsel %vm869, %v1895, %v1561
  %v1912 = vsel %vm869, %v1896, %v1563
  %v1913 = vsel %vm869, %v1897, %v1565
  %v1914 = vsel %vm869, %v1898, %v1567
  %v1915 = vsel %vm869, %v1899, %v1569
  %v1916 = vsel %vm869, %v1900, %v1571
  %v1917 = vsel %vm869, %v1901, %v1573
  %v1918 = vsel %vm869, %v1902, %v1575
  %v1919 = vsel %vm869, %v1903, %v1577
  %v1920 = vsel %vm869, %v1904, %v1579
  %v1921 = vsel %vm869, %v1905, %v1581
  %v1922 = vsel %vm869, %v1906, %v1583
  %v1923 = vsel %vm869, %v1907, %v1585
  %v1924 = vsel %vm869, %v1908, %v1587
  %v1925 = vsel %vm869, %v1909, %v1589
  %vm1926 = vcmask 326656
  %v1927 = vsel %vm1926, %v1910, %v1623
  %v1928 = vsel %vm1926, %v1911, %v1625
  %v1929 = vsel %vm1926, %v1912, %v1627
  %v1930 = vsel %vm1926, %v1913, %v1629
  %v1931 = vsel %vm1926, %v1914, %v1631
  %v1932 = vsel %vm1926, %v1915, %v1633
  %v1933 = vsel %vm1926, %v1916, %v1635
  %v1934 = vsel %vm1926, %v1917, %v1637
  %v1935 = vsel %vm1926, %v1918, %v1639
  %v1936 = vsel %vm1926, %v1919, %v1641
  %v1937 = vsel %vm1926, %v1920, %v1643
  %v1938 = vsel %vm1926, %v1921, %v1645
  %v1939 = vsel %vm1926, %v1922, %v1647
  %v1940 = vsel %vm1926, %v1923, %v1649
  %v1941 = vsel %vm1926, %v1924, %v1651
  %v1942 = vsel %vm1926, %v1925, %v1653
  %vm1943 = vcmask 392192
  %v1944 = vsel %vm1943, %v1927, %v1687
  %v1945 = vsel %vm1943, %v1928, %v1689
  %v1946 = vsel %vm1943, %v1929, %v1691
  %v1947 = vsel %vm1943, %v1930, %v1693
  %v1948 = vsel %vm1943, %v1931, %v1695
  %v1949 = vsel %vm1943, %v1932, %v1697
  %v1950 = vsel %vm1943, %v1933, %v1699
  %v1951 = vsel %vm1943, %v1934, %v1701
  %v1952 = vsel %vm1943, %v1935, %v1703
  %v1953 = vsel %vm1943, %v1936, %v1705
  %v1954 = vsel %vm1943, %v1937, %v1707
  %v1955 = vsel %vm1943, %v1938, %v1709
  %v1956 = vsel %vm1943, %v1939, %v1711
  %v1957 = vsel %vm1943, %v1940, %v1713
  %v1958 = vsel %vm1943, %v1941, %v1715
  %v1959 = vsel %vm1943, %v1942, %v1717
  %vm1960 = vcmask 457728
  %v1961 = vsel %vm1960, %v1944, %v1751
  %v1962 = vsel %vm1960, %v1945, %v1753
  %v1963 = vsel %vm1960, %v1946, %v1755
  %v1964 = vsel %vm1960, %v1947, %v1757
  %v1965 = vsel %vm1960, %v1948, %v1759
  %v1966 = vsel %vm1960, %v1949, %v1761
  %v1967 = vsel %vm1960, %v1950, %v1763
  %v1968 = vsel %vm1960, %v1951, %v1765
  %v1969 = vsel %vm1960, %v1952, %v1767
  %v1970 = vsel %vm1960, %v1953, %v1769
  %v1971 = vsel %vm1960, %v1954, %v1771
  %v1972 = vsel %vm1960, %v1955, %v1773
  %v1973 = vsel %vm1960, %v1956, %v1775
  %v1974 = vsel %vm1960, %v1957, %v1777
  %v1975 = vsel %vm1960, %v1958, %v1779
  %v1976 = vsel %vm1960, %v1959, %v1781
  %vm1977 = vcmask 523264
  %v1978 = vsel %vm1977, %v1961, %v1815
  %v1979 = vsel %vm1977, %v1962, %v1817
  %v1980 = vsel %vm1977, %v1963, %v1819
  %v1981 = vsel %vm1977, %v1964, %v1821
  %v1982 = vsel %vm1977, %v1965, %v1823
  %v1983 = vsel %vm1977, %v1966, %v1825
  %v1984 = vsel %vm1977, %v1967, %v1827
  %v1985 = vsel %vm1977, %v1968, %v1829
  %v1986 = vsel %vm1977, %v1969, %v1831
  %v1987 = vsel %vm1977, %v1970, %v1833
  %v1988 = vsel %vm1977, %v1971, %v1835
  %v1989 = vsel %vm1977, %v1972, %v1837
  %v1990 = vsel %vm1977, %v1973, %v1839
  %v1991 = vsel %vm1977, %v1974, %v1841
  %v1992 = vsel %vm1977, %v1975, %v1843
  %v1993 = vsel %vm1977, %v1976, %v1845
  %v1994 = vld [vmem:[%s2] sm:$0xff]
  %v1995 = vld [vmem:[%s2 + $0x8] sm:$0xff]
  %v1996 = vld [vmem:[%s2 + $0x10] sm:$0xff]
  %v1997 = vld [vmem:[%s2 + $0x18] sm:$0xff]
  %v1998 = vld [vmem:[%s2 + $0x20] sm:$0xff]
  %v1999 = vld [vmem:[%s2 + $0x28] sm:$0xff]
  %v2000 = vld [vmem:[%s2 + $0x30] sm:$0xff]
  %v2001 = vld [vmem:[%s2 + $0x38] sm:$0xff]
  %v2002 = vld [vmem:[%s2 + $0x40] sm:$0xff]
  %vm2003 = vcmask 588800
  %v2005 = vsel %vm2003, %v1978, 0
  %v2008 = vsel %vm2003, %v1979, 0
  %v2011 = vsel %vm2003, %v1980, 0
  %v2014 = vsel %vm2003, %v1981, 0
  %v2017 = vsel %vm2003, %v1982, 0
  %v2020 = vsel %vm2003, %v1983, 0
  %v2023 = vsel %vm2003, %v1984, 0
  %v2026 = vsel %vm2003, %v1985, 0
  %v2029 = vsel %vm2003, %v1986, 0
  %v2032 = vsel %vm2003, %v1987, 0
  %v2035 = vsel %vm2003, %v1988, 0
  %v2038 = vsel %vm2003, %v1989, 0
  %v2041 = vsel %vm2003, %v1990, 0
  %v2044 = vsel %vm2003, %v1991, 0
  %v2047 = vsel %vm2003, %v1992, 0
  %v2050 = vsel %vm2003, %v1993, 0
  %2052 = vmatprep.subr.mxu0 0.0
  %2053 = vmatpush1.msra.mxu0 %v1994
  %2054 = vmatprep.subr.mxu0 0.0
  %2055 = vmatpush1.msra.mxu0 %v1995
  %2056 = vmatprep.subr.mxu0 0.0
  %2057 = vmatpush1.msra.mxu0 %v1996
  %2058 = vmatprep.subr.mxu0 0.0
  %2059 = vmatpush1.msra.mxu0 %v1997
  %2060 = vmatprep.subr.mxu0 0.0
  %2061 = vmatpush1.msra.mxu0 %v1998
  %2062 = vmatprep.subr.mxu0 0.0
  %2063 = vmatpush1.msra.mxu0 %v1999
  %2064 = vmatprep.subr.mxu0 0.0
  %2065 = vmatpush1.msra.mxu0 %v2000
  %2066 = vmatprep.subr.mxu0 0.0
  %2067 = vmatpush1.msra.mxu0 %v2001
  %2068 = vmatprep.subr.mxu0 0.0
  %2069 = vmatpush1.msra.mxu0 %v2002
  %2070 = vmatprep.subr.mxu0 0.0
  %2071 = vmatpush1.msra.mxu0 0.0
  %2072 = vmatprep.subr.mxu0 0.0
  %2073 = vmatpush1.msra.mxu0 0.0
  %2074 = vmatprep.subr.mxu0 0.0
  %2075 = vmatpush1.msra.mxu0 0.0
  %2076 = vmatprep.subr.mxu0 0.0
  %2077 = vmatpush1.msra.mxu0 0.0
  %2078 = vmatprep.subr.mxu0 0.0
  %2079 = vmatpush1.msra.mxu0 0.0
  %2080 = vmatprep.subr.mxu0 0.0
  %2081 = vmatpush1.msra.mxu0 0.0
  %2082 = vmatprep.subr.mxu0 0.0
  %2083 = vmatpush1.msra.mxu0 0.0
  %2084 = vmatprep.subr.mxu0 0.0
  %2085 = vmatpush1.msra.mxu0 0.0
  %2086 = vmatprep.subr.mxu0 0.0
  %2087 = vmatpush1.msra.mxu0 0.0
  %2088 = vmatprep.subr.mxu0 0.0
  %2089 = vmatpush1.msra.mxu0 0.0
  %2090 = vmatprep.subr.mxu0 0.0
  %2091 = vmatpush1.msra.mxu0 0.0
  %2092 = vmatprep.subr.mxu0 0.0
  %2093 = vmatpush1.msra.mxu0 0.0
  %2094 = vmatprep.subr.mxu0 0.0
  %2095 = vmatpush1.msra.mxu0 0.0
  %2096 = vmatprep.subr.mxu0 0.0
  %2097 = vmatpush1.msra.mxu0 0.0
  %2098 = vmatprep.subr.mxu0 0.0
  %2099 = vmatpush1.msra.mxu0 0.0
  %2100 = vmatprep.subr.mxu0 0.0
  %2101 = vmatpush1.msra.mxu0 0.0
  %2102 = vmatprep.subr.mxu0 0.0
  %2103 = vmatpush1.msra.mxu0 0.0
  %2104 = vmatprep.subr.mxu0 0.0
  %2105 = vmatpush1.msra.mxu0 0.0
  %2106 = vmatprep.subr.mxu0 0.0
  %2107 = vmatpush1.msra.mxu0 0.0
  %2108 = vmatprep.subr.mxu0 0.0
  %2109 = vmatpush1.msra.mxu0 0.0
  %2110 = vmatprep.subr.mxu0 0.0
  %2111 = vmatpush1.msra.mxu0 0.0
  %2112 = vmatprep.subr.mxu0 0.0
  %2113 = vmatpush1.msra.mxu0 0.0
  %2114 = vmatprep.subr.mxu0 0.0
  %2115 = vmatpush1.msra.mxu0 0.0
  %2116 = vmatprep.mubr.f32.mxu0 0.0
  %2117 = vmatmul.mubr.f32.gmra.mrb[0].mxu0 %v2005
  %v2118 = vpop.f32.mrb[0].mxu0
  %v2119 = vadd.f32 0.0, %v2118
  %v2120 = vpop.f32.mrb[0].mxu0
  %2121 = vmatprep.mubr.f32.mxu0 0.0
  %2122 = vmatmul.mubr.f32.gmra.mrb[0].mxu0 %v2008
  %v2123 = vpop.f32.mrb[0].mxu0
  %v2124 = vadd.f32 0.0, %v2123
  %v2125 = vpop.f32.mrb[0].mxu0
  %2126 = vmatprep.mubr.f32.mxu0 0.0
  %2127 = vmatmul.mubr.f32.gmra.mrb[0].mxu0 %v2011
  %v2128 = vpop.f32.mrb[0].mxu0
  %v2129 = vadd.f32 0.0, %v2128
  %v2130 = vpop.f32.mrb[0].mxu0
  %2131 = vmatprep.mubr.f32.mxu0 0.0
  %2132 = vmatmul.mubr.f32.gmra.mrb[0].mxu0 %v2014
  %v2133 = vpop.f32.mrb[0].mxu0
  %v2134 = vadd.f32 0.0, %v2133
  %v2135 = vpop.f32.mrb[0].mxu0
  %2136 = vmatprep.mubr.f32.mxu0 0.0
  %2137 = vmatmul.mubr.f32.gmra.mrb[0].mxu0 %v2017
  %v2138 = vpop.f32.mrb[0].mxu0
  %v2139 = vadd.f32 0.0, %v2138
  %v2140 = vpop.f32.mrb[0].mxu0
  %2141 = vmatprep.mubr.f32.mxu0 0.0
  %2142 = vmatmul.mubr.f32.gmra.mrb[0].mxu0 %v2020
  %v2143 = vpop.f32.mrb[0].mxu0
  %v2144 = vadd.f32 0.0, %v2143
  %v2145 = vpop.f32.mrb[0].mxu0
  %2146 = vmatprep.mubr.f32.mxu0 0.0
  %2147 = vmatmul.mubr.f32.gmra.mrb[0].mxu0 %v2023
  %v2148 = vpop.f32.mrb[0].mxu0
  %v2149 = vadd.f32 0.0, %v2148
  %v2150 = vpop.f32.mrb[0].mxu0
  %2151 = vmatprep.mubr.f32.mxu0 0.0
  %2152 = vmatmul.mubr.f32.gmra.mrb[0].mxu0 %v2026
  %v2153 = vpop.f32.mrb[0].mxu0
  %v2154 = vadd.f32 0.0, %v2153
  %v2155 = vpop.f32.mrb[0].mxu0
  %2156 = vmatprep.mubr.f32.mxu0 0.0
  %2157 = vmatmul.mubr.f32.gmra.mrb[0].mxu0 %v2029
  %v2158 = vpop.f32.mrb[0].mxu0
  %v2159 = vadd.f32 0.0, %v2158
  %v2160 = vpop.f32.mrb[0].mxu0
  %2161 = vmatprep.mubr.f32.mxu0 0.0
  %2162 = vmatmul.mubr.f32.gmra.mrb[0].mxu0 %v2032
  %v2163 = vpop.f32.mrb[0].mxu0
  %v2164 = vadd.f32 0.0, %v2163
  %v2165 = vpop.f32.mrb[0].mxu0
  %2166 = vmatprep.mubr.f32.mxu0 0.0
  %2167 = vmatmul.mubr.f32.gmra.mrb[0].mxu0 %v2035
  %v2168 = vpop.f32.mrb[0].mxu0
  %v2169 = vadd.f32 0.0, %v2168
  %v2170 = vpop.f32.mrb[0].mxu0
  %2171 = vmatprep.mubr.f32.mxu0 0.0
  %2172 = vmatmul.mubr.f32.gmra.mrb[0].mxu0 %v2038
  %v2173 = vpop.f32.mrb[0].mxu0
  %v2174 = vadd.f32 0.0, %v2173
  %v2175 = vpop.f32.mrb[0].mxu0
  %2176 = vmatprep.mubr.f32.mxu0 0.0
  %2177 = vmatmul.mubr.f32.gmra.mrb[0].mxu0 %v2041
  %v2178 = vpop.f32.mrb[0].mxu0
  %v2179 = vadd.f32 0.0, %v2178
  %v2180 = vpop.f32.mrb[0].mxu0
  %2181 = vmatprep.mubr.f32.mxu0 0.0
  %2182 = vmatmul.mubr.f32.gmra.mrb[0].mxu0 %v2044
  %v2183 = vpop.f32.mrb[0].mxu0
  %v2184 = vadd.f32 0.0, %v2183
  %v2185 = vpop.f32.mrb[0].mxu0
  %2186 = vmatprep.mubr.f32.mxu0 0.0
  %2187 = vmatmul.mubr.f32.gmra.mrb[0].mxu0 %v2047
  %v2188 = vpop.f32.mrb[0].mxu0
  %v2189 = vadd.f32 0.0, %v2188
  %v2190 = vpop.f32.mrb[0].mxu0
  %2191 = vmatprep.mubr.f32.mxu0 0.0
  %2192 = vmatmul.mubr.f32.gmra.mrb[0].mxu0 %v2050
  %v2193 = vpop.f32.mrb[0].mxu0
  %v2194 = vadd.f32 0.0, %v2193
  %v2195 = vpop.f32.mrb[0].mxu0
  %2196 = vdwg.mxu0
  %v2197 = vlaneseq
  %v2198 = vshrl.u32 %v2197, 7
  %v2199 = vsub.s32 0, %v2198
  %v2200 = vrot.slane %v1145, %v2199
  %v2201 = vmul.f32 %v2119, %v2200
  %v2202 = vmul.f32 %v2124, %v2200
  %v2203 = vmul.f32 %v2129, %v2200
  %v2204 = vmul.f32 %v2134, %v2200
  %v2205 = vmul.f32 %v2139, %v2200
  %v2206 = vmul.f32 %v2144, %v2200
  %v2207 = vmul.f32 %v2149, %v2200
  %v2208 = vmul.f32 %v2154, %v2200
  %v2209 = vmul.f32 %v2159, %v2200
  %v2210 = vmul.f32 %v2164, %v2200
  %v2211 = vmul.f32 %v2169, %v2200
  %v2212 = vmul.f32 %v2174, %v2200
  %v2213 = vmul.f32 %v2179, %v2200
  %v2214 = vmul.f32 %v2184, %v2200
  %v2215 = vmul.f32 %v2189, %v2200
  %v2216 = vmul.f32 %v2194, %v2200
  %v2217 = vlaneseq
  %v2218 = vshrl.u32 %v2217, 7
  %v2219 = vsub.s32 0, %v2218
  %v2220 = vrot.slane %v1146, %v2219
  %v2221 = vadd.f32 %v2201, %v2220
  %v2222 = vadd.f32 %v2202, %v2220
  %v2223 = vadd.f32 %v2203, %v2220
  %v2224 = vadd.f32 %v2204, %v2220
  %v2225 = vadd.f32 %v2205, %v2220
  %v2226 = vadd.f32 %v2206, %v2220
  %v2227 = vadd.f32 %v2207, %v2220
  %v2228 = vadd.f32 %v2208, %v2220
  %v2229 = vadd.f32 %v2209, %v2220
  %v2230 = vadd.f32 %v2210, %v2220
  %v2231 = vadd.f32 %v2211, %v2220
  %v2232 = vadd.f32 %v2212, %v2220
  %v2233 = vadd.f32 %v2213, %v2220
  %v2234 = vadd.f32 %v2214, %v2220
  %v2235 = vadd.f32 %v2215, %v2220
  %v2236 = vadd.f32 %v2216, %v2220
  %v2237 = vmax.f32 %v2221, 0.0
  %v2238 = vmax.f32 %v2222, 0.0
  %v2239 = vmax.f32 %v2223, 0.0
  %v2240 = vmax.f32 %v2224, 0.0
  %v2241 = vmax.f32 %v2225, 0.0
  %v2242 = vmax.f32 %v2226, 0.0
  %v2243 = vmax.f32 %v2227, 0.0
  %v2244 = vmax.f32 %v2228, 0.0
  %v2245 = vmax.f32 %v2229, 0.0
  %v2246 = vmax.f32 %v2230, 0.0
  %v2247 = vmax.f32 %v2231, 0.0
  %v2248 = vmax.f32 %v2232, 0.0
  %v2249 = vmax.f32 %v2233, 0.0
  %v2250 = vmax.f32 %v2234, 0.0
  %v2251 = vmax.f32 %v2235, 0.0
  %v2252 = vmax.f32 %v2236, 0.0
  %2253 = vxpose.xlu0.b32.start [1/16] %v2237, 128
  %2254 = vxpose.xlu0.b32.cont [2/16] %v2238, 128
  %2255 = vxpose.xlu0.b32.cont [3/16] %v2239, 128
  %2256 = vxpose.xlu0.b32.cont [4/16] %v2240, 128
  %2257 = vxpose.xlu0.b32.cont [5/16] %v2241, 128
  %2258 = vxpose.xlu0.b32.cont [6/16] %v2242, 128
  %2259 = vxpose.xlu0.b32.cont [7/16] %v2243, 128
  %2260 = vxpose.xlu0.b32.cont [8/16] %v2244, 128
  %2261 = vxpose.xlu0.b32.cont [9/16] %v2245, 128
  %2262 = vxpose.xlu0.b32.cont [10/16] %v2246, 128
  %2263 = vxpose.xlu0.b32.cont [11/16] %v2247, 128
  %2264 = vxpose.xlu0.b32.cont [12/16] %v2248, 128
  %2265 = vxpose.xlu0.b32.cont [13/16] %v2249, 128
  %2266 = vxpose.xlu0.b32.cont [14/16] %v2250, 128
  %2267 = vxpose.xlu0.b32.cont [15/16] %v2251, 128
  %2268 = vxpose.xlu0.b32.end [16/16] %v2252, 128
  %v2269 = vpop.trf.xlu0
  %v2270 = vpop.trf.xlu0
  %v2271 = vpop.trf.xlu0
  %v2272 = vpop.trf.xlu0
  %v2273 = vpop.trf.xlu0
  %v2274 = vpop.trf.xlu0
  %v2275 = vpop.trf.xlu0
  %v2276 = vpop.trf.xlu0
  %v2277 = vpop.trf.xlu0
  %v2278 = vpop.trf.xlu0
  %v2279 = vpop.trf.xlu0
  %v2280 = vpop.trf.xlu0
  %v2281 = vpop.trf.xlu0
  %v2282 = vpop.trf.xlu0
  %v2283 = vpop.trf.xlu0
  %v2284 = vpop.trf.xlu0
  %2285 = vst [vmem:[%s4] sm:$0xff] %v2269
  // Predicated region
  $region18: #{down_forward.1} parent=0 // pred_check
    _
  $region19: #{down_forward.1} parent=0 // pred_check_branch
    %2287 = sbr.rel (0) target = $region21
  $region20: #{down_forward.1} parent=0 // pred_region
    _
  $region21: #{down_forward.1} parent=0 // pred_fallthru
    _
  // Predicated region
  $region22: #{down_forward.1} parent=0 // pred_check
    _
  $region23: #{down_forward.1} parent=0 // pred_check_branch
    %2289 = sbr.rel (0) target = $region25
  $region24: #{down_forward.1} parent=0 // pred_region
    _
  $region25: #{down_forward.1} parent=0 // pred_fallthru
    _

</llo_original>
